<compile_context>
chip_gen: v7x
topology: tpu7x:2x2x1
jax: 0.10.0
libtpu: 0.0.40
codegen_flags: <defaults>
</compile_context>

<pallas_src>
import functools

import jax
import jax.numpy as jnp
from jax import lax
from jax.experimental import pallas as pl
from jax.experimental.pallas import tpu as pltpu

CP = 128  # padded channel width (one full lane tile)


# ------------------------------ fused Pallas kernel ------------------------------
def _fused_two_stage_kernel(p1_ref, w1_ref, b1_ref, w2_ref, b2_ref, out_ref,
                            y2s_ref, *, hq, wq):
    """layer2 + layer3 (each conv3x3/s2/p1 + bias + ReLU) for ONE batch element.

    p1_ref : (4, M, K1p)   stage-1 im2col patches per output-parity group, M = hq*(wq+1)
                           (last output column of each group is a junk column).
    w1_ref : (K1p, CP)     layer2 weight, rows ordered [kh, kw, cin], zero-padded.
    b1_ref : (1, CP)
    w2_ref : (9, CP, CP)   layer3 weight per tap (cin x cout), zero-padded.
    b2_ref : (1, CP)
    out_ref: (M, CP)       layer3 output rows ordered (oh3, ow3) over (hq, wq+1) w/ junk col.
    y2s_ref: ((hq+1)*(wq+1)+1, 4*CP) scratch: flattened space-to-depth(2) packing of the
             zero-padded layer2 output; lane block = parity of the padded coordinate.
    """
    wq1 = wq + 1
    m = hq * wq1

    # Zero once per grid step (scratch persists across the batch grid): every cell that
    # stage 1 does not overwrite is exactly part of layer3's zero padding ring.
    y2s_ref[...] = jnp.zeros_like(y2s_ref)

    # Rows whose flattened index falls in the junk output column (ow == wq).  Their stage-1
    # values land on padding-ring cells of the scratch, so they must be forced to zero.
    col_idx = lax.broadcasted_iota(jnp.int32, (m, CP), 0) % wq1
    valid = col_idx < wq

    # ---------------- stage 1: layer2, one big matmul + one slab store per parity group ----
    for a in (0, 1):
        for b in (0, 1):
            g = 2 * a + b
            yg = jnp.dot(p1_ref[g], w1_ref[...],
                         preferred_element_type=jnp.float32)        # (m, CP)
            yg = jnp.maximum(yg + b1_ref[...], 0.0)
            yg = jnp.where(valid, yg, 0.0)
            # parity of the *padded* layer-2 coordinate selects the lane block
            lane0 = ((1 - a) * 2 + (1 - b)) * CP
            s0 = a * wq1 + b
            y2s_ref[s0:s0 + m, lane0:lane0 + CP] = yg                # ONE contiguous slab

    # ---------------- stage 2: layer3, 9 taps, one large-M matmul each ----------------------
    acc = jnp.zeros((m, CP), jnp.float32)
    for kh in range(3):
        for kw in range(3):
            lane0 = ((kh % 2) * 2 + (kw % 2)) * CP
            s0 = (kh // 2) * wq1 + (kw // 2)
            lhs = y2s_ref[s0:s0 + m, lane0:lane0 + CP]               # (m, CP), unit-stride
            acc = acc + jnp.dot(lhs, w2_ref[kh * 3 + kw],
                                preferred_element_type=jnp.float32)
    out_ref[...] = jnp.maximum(acc + b2_ref[...], 0.0)


# --------------------------------- wrapper glue ----------------------------------
def _stage1_patches_grouped(xp, ho2, wo2, cin, k1p):
    """im2col for conv3x3/s2 on padded NHWC input, grouped by layer-2 output parity.

    Returns (N, 4, hq*(wq+1), k1p); per group, column index wq is a zero junk column so the
    kernel's stage-1 store is a single contiguous slab.  Feature order is [kh, kw, cin],
    zero-padded from 9*cin to k1p lanes.
    """
    n = xp.shape[0]
    views = []
    for kh in range(3):
        for kw in range(3):
            views.append(xp[:, kh:kh + 2 * ho2 - 1:2, kw:kw + 2 * wo2 - 1:2, :])
    pfull = jnp.concatenate(views, axis=-1)                       # (N, ho2, wo2, 9*cin)
    hq, wq = ho2 // 2, wo2 // 2
    groups = []
    for a in (0, 1):
        for b in (0, 1):
            g = pfull[:, a::2, b::2, :]                           # (N, hq, wq, 9*cin)
            g = jnp.pad(g, ((0, 0), (0, 0), (0, 1), (0, 0)))      # junk output column
            groups.append(g.reshape(n, hq * (wq + 1), 9 * cin))
    p1 = jnp.stack(groups, axis=1)                                # (N, 4, M, 9*cin)
    return jnp.pad(p1, ((0, 0), (0, 0), (0, 0), (0, k1p - 9 * cin)))


def feature_extractor_modified(x_nchw, params):
    """Mirrors FeatureExtractorModified.forward: x2=layer2(x); x3=layer3(x2); return x3.

    layer4 is computed-and-discarded in the PyTorch module => dead code for the returned
    value => eliminated here (params[2] is intentionally unused).
    """
    (w2_t, b2_t), (w3_t, b3_t) = params[0], params[1]
    N, C, H, W = x_nchw.shape
    C2, C3 = w2_t.shape[0], w3_t.shape[0]
    assert H % 4 == 0 and W % 4 == 0 and C2 <= CP and C3 <= CP
    Ho2, Wo2 = H // 2, W // 2
    Hq, Wq = Ho2 // 2, Wo2 // 2                   # == Ho3, Wo3
    Wq1 = Wq + 1
    M = Hq * Wq1                                  # output rows per batch (with junk column)
    K1p = ((9 * C + CP - 1) // CP) * CP
    R = (Hq + 1) * Wq1 + 1                        # packed-scratch rows (flat, + wrap row)

    # NHWC once + zero-pad once (stays NHWC until the final output transpose).
    x = jnp.transpose(x_nchw, (0, 2, 3, 1))
    xp = jnp.pad(x, ((0, 0), (1, 1), (1, 1), (0, 0)))
    p1 = _stage1_patches_grouped(xp, Ho2, Wo2, C, K1p)            # (N, 4, M, K1p)

    # layer2 weight -> (K1p, CP); layer3 weight -> (9, CP, CP); channels zero-padded to 128.
    w1 = jnp.transpose(w2_t, (2, 3, 1, 0)).reshape(9 * C, C2)
    w1 = jnp.pad(w1, ((0, K1p - 9 * C), (0, CP - C2)))
    b1 = jnp.pad(b2_t, (0, CP - C2)).reshape(1, CP)
    w2 = jnp.transpose(w3_t, (2, 3, 1, 0)).reshape(9, C2, C3)
    w2 = jnp.pad(w2, ((0, 0), (0, CP - C2), (0, CP - C3)))
    b2 = jnp.pad(b3_t, (0, CP - C3)).reshape(1, CP)

    kernel = functools.partial(_fused_two_stage_kernel, hq=Hq, wq=Wq)
    out = pl.pallas_call(
        kernel,
        out_shape=jax.ShapeDtypeStruct((N, M, CP), jnp.float32),
        grid=(N,),
        in_specs=[
            pl.BlockSpec((None, 4, M, K1p), lambda n: (n, 0, 0, 0)),   # per-batch patch block
            pl.BlockSpec((K1p, CP), lambda n: (0, 0)),                 # weights stay resident
            pl.BlockSpec((1, CP), lambda n: (0, 0)),
            pl.BlockSpec((9, CP, CP), lambda n: (0, 0, 0)),
            pl.BlockSpec((1, CP), lambda n: (0, 0)),
        ],
        out_specs=pl.BlockSpec((None, M, CP), lambda n: (n, 0, 0)),
        scratch_shapes=[pltpu.VMEM((R, 4 * CP), jnp.float32)],
        compiler_params=pltpu.CompilerParams(
            dimension_semantics=("parallel",),          # megacore sharding on v7x
            vmem_limit_bytes=32 * 1024 * 1024,          # per-step footprint ~1 MiB; safe on all gens
        ),
    )(p1, w1, b1, w2, b2)

    # Drop the junk output column and channel padding; back to NCHW.
    y3 = out.reshape(N, Hq, Wq1, CP)[:, :, :Wq, :C3]
    return jnp.transpose(y3, (0, 3, 1, 2))


# ------------------------------------- main ---------------------------------------
def make_params(key, cin, cout):
    kw, kb = jax.random.split(key)
    fan_in = cin * 9
    w = jax.random.normal(kw, (cout, cin, 3, 3), jnp.float32) / jnp.sqrt(fan_in)
    b = jax.random.normal(kb, (cout,), jnp.float32) * 0.01
    return w, b


if __name__ == "__main__":
    key = jax.random.PRNGKey(0)
    k_in, k2, k3, k4 = jax.random.split(key, 4)

    N, C, H, W = 2, 4, 16, 16
    x = jax.random.normal(k_in, (N, C, H, W), jnp.float32)

    params = (
        make_params(k2, C, 2 * C),        # layer2: 4 ->  8, 16x16 -> 8x8
        make_params(k3, 2 * C, 4 * C),    # layer3: 8 -> 16,  8x8  -> 4x4
        make_params(k4, 4 * C, 8 * C),    # layer4: dead code (result discarded by module)
    )

    fwd = jax.jit(feature_extractor_modified)
    x3 = jax.block_until_ready(fwd(x, params))
    assert x3.shape == (N, 4 * C, H // 4, W // 4), x3.shape

    # Silent sanity check against XLA's reference convolution (f32 path -> tight tolerance).
    def ref_stage(inp, w, b):
        y = jax.lax.conv_general_dilated(
            inp, w, window_strides=(2, 2), padding=((1, 1), (1, 1)),
            dimension_numbers=("NCHW", "OIHW", "NCHW"))
        return jnp.maximum(y + b[None, :, None, None], 0.0)

    r = ref_stage(ref_stage(x, *params[0]), *params[1])
    assert jnp.allclose(x3, r, atol=1e-4, rtol=1e-4), float(jnp.max(jnp.abs(x3 - r)))

    print("KERNEL_OK")
</pallas_src>

<mosaic_0001>
module attributes {stable_mosaic.version = 11 : i64} {
  func.func @_fused_two_stage_kernel(%arg0: i32, %arg1: memref<1x4x20x128xf32, #tpu.memory_space<vmem>>, %arg2: memref<128x128xf32, #tpu.memory_space<vmem>>, %arg3: memref<1x128xf32, #tpu.memory_space<vmem>>, %arg4: memref<9x128x128xf32, #tpu.memory_space<vmem>>, %arg5: memref<1x128xf32, #tpu.memory_space<vmem>>, %arg6: memref<1x20x128xf32, #tpu.memory_space<vmem>>, %arg7: memref<26x512xf32, #tpu.memory_space<vmem>>) attributes {dimension_semantics = [#tpu.dimension_semantics<parallel>], iteration_bounds = array<i64: 2>, scalar_prefetch = 0 : i64, scratch_operands = 1 : i64, tpu.core_type = #tpu.core_type<tc>, window_params = [{transform_indices = @transform_0, window_bounds = array<i64: 1, 4, 20, 128>}, {pipeline_mode = #tpu.pipeline_mode<synchronous>, transform_indices = @transform_1, window_bounds = array<i64: 128, 128>}, {pipeline_mode = #tpu.pipeline_mode<synchronous>, transform_indices = @transform_2, window_bounds = array<i64: 1, 128>}, {pipeline_mode = #tpu.pipeline_mode<synchronous>, transform_indices = @transform_3, window_bounds = array<i64: 9, 128, 128>}, {pipeline_mode = #tpu.pipeline_mode<synchronous>, transform_indices = @transform_4, window_bounds = array<i64: 1, 128>}, {transform_indices = @transform_5, window_bounds = array<i64: 1, 20, 128>}]} {
    %cst = arith.constant 0.000000e+00 : f32
    %0 = vector.broadcast %cst : f32 to vector<26x512xf32>
    %c0 = arith.constant 0 : index
    %c0_0 = arith.constant 0 : index
    %1 = vector.load %arg7[%c0, %c0_0] : memref<26x512xf32, #tpu.memory_space<vmem>>, vector<26x512xf32>
    tpu.vector_store %arg7[%c0, %c0_0], %0 {strides = array<i32>} : memref<26x512xf32, #tpu.memory_space<vmem>>, vector<26x512xf32>,
    %2 = tpu.iota {dimensions = array<i32: 0>} : vector<20x128xi32>
    %c5_i32 = arith.constant 5 : i32
    %c0_i32 = arith.constant 0 : i32
    %3 = arith.cmpi eq, %c5_i32, %c0_i32 : i32
    %c1_i32 = arith.constant 1 : i32
    %4 = arith.select %3, %c1_i32, %c5_i32 : i32
    %5 = vector.broadcast %4 : i32 to vector<20x128xi32>
    %6 = arith.remsi %2, %5 : vector<20x128xi32>
    %c0_i32_1 = arith.constant 0 : i32
    %7 = vector.broadcast %c0_i32_1 : i32 to vector<20x128xi32>
    %8 = arith.cmpi ne, %6, %7 : vector<20x128xi32>
    %c0_i32_2 = arith.constant 0 : i32
    %9 = vector.broadcast %c0_i32_2 : i32 to vector<20x128xi32>
    %10 = arith.cmpi slt, %6, %9 : vector<20x128xi32>
    %c0_i32_3 = arith.constant 0 : i32
    %11 = arith.cmpi slt, %4, %c0_i32_3 : i32
    %12 = vector.broadcast %11 : i1 to vector<20x128xi1>
    %13 = vector.broadcast %12 : vector<20x128xi1> to vector<20x128xi1>
    %14 = arith.xori %10, %13 : vector<20x128xi1>
    %15 = arith.andi %14, %8 : vector<20x128xi1>
    %16 = vector.broadcast %4 : i32 to vector<20x128xi32>
    %17 = arith.addi %6, %16 : vector<20x128xi32>
    %18 = arith.select %15, %17, %6 : vector<20x128xi1>, vector<20x128xi32>
    %c4_i32 = arith.constant 4 : i32
    %19 = vector.broadcast %c4_i32 : i32 to vector<20x128xi32>
    %20 = arith.cmpi slt, %18, %19 : vector<20x128xi32>
    %c0_4 = arith.constant 0 : index
    %c0_5 = arith.constant 0 : index
    %c0_6 = arith.constant 0 : index
    %c0_7 = arith.constant 0 : index
    %21 = vector.load %arg1[%c0_4, %c0_5, %c0_6, %c0_7] : memref<1x4x20x128xf32, #tpu.memory_space<vmem>>, vector<1x1x20x128xf32>
    %22 = vector.shape_cast %21 : vector<1x1x20x128xf32> to vector<20x128xf32>
    %c0_8 = arith.constant 0 : index
    %c0_9 = arith.constant 0 : index
    %23 = vector.load %arg2[%c0_8, %c0_9] : memref<128x128xf32, #tpu.memory_space<vmem>>, vector<128x128xf32>
    %cst_10 = arith.constant dense<0.000000e+00> : vector<20x128xf32>
    %24 = tpu.matmul %22, %23, %cst_10 {dimension_numbers = #tpu.dot_dimension_numbers<[1], [0], [0], [1], [0, 0, 1, 1], [], []>} : vector<20x128xf32>, vector<128x128xf32>, vector<20x128xf32> -> vector<20x128xf32>
    %c0_11 = arith.constant 0 : index
    %c0_12 = arith.constant 0 : index
    %25 = vector.load %arg3[%c0_11, %c0_12] : memref<1x128xf32, #tpu.memory_space<vmem>>, vector<1x128xf32>
    %26 = vector.broadcast %25 : vector<1x128xf32> to vector<20x128xf32>
    %27 = arith.addf %24, %26 : vector<20x128xf32>
    %cst_13 = arith.constant 0.000000e+00 : f32
    %28 = vector.broadcast %cst_13 : f32 to vector<20x128xf32>
    %29 = arith.maximumf %27, %28 : vector<20x128xf32>
    %cst_14 = arith.constant 0.000000e+00 : f32
    %30 = vector.broadcast %cst_14 : f32 to vector<20x128xf32>
    %31 = arith.select %20, %29, %30 : vector<20x128xi1>, vector<20x128xf32>
    %c0_15 = arith.constant 0 : index
    %c384 = arith.constant 384 : index
    %32 = vector.load %arg7[%c0_15, %c384] : memref<26x512xf32, #tpu.memory_space<vmem>>, vector<20x128xf32>
    tpu.vector_store %arg7[%c0_15, %c384], %31 {strides = array<i32>} : memref<26x512xf32, #tpu.memory_space<vmem>>, vector<20x128xf32>,
    %c0_16 = arith.constant 0 : index
    %c1 = arith.constant 1 : index
    %c0_17 = arith.constant 0 : index
    %c0_18 = arith.constant 0 : index
    %33 = vector.load %arg1[%c0_16, %c1, %c0_17, %c0_18] : memref<1x4x20x128xf32, #tpu.memory_space<vmem>>, vector<1x1x20x128xf32>
    %34 = vector.shape_cast %33 : vector<1x1x20x128xf32> to vector<20x128xf32>
    %c0_19 = arith.constant 0 : index
    %c0_20 = arith.constant 0 : index
    %35 = vector.load %arg2[%c0_19, %c0_20] : memref<128x128xf32, #tpu.memory_space<vmem>>, vector<128x128xf32>
    %cst_21 = arith.constant dense<0.000000e+00> : vector<20x128xf32>
    %36 = tpu.matmul %34, %35, %cst_21 {dimension_numbers = #tpu.dot_dimension_numbers<[1], [0], [0], [1], [0, 0, 1, 1], [], []>} : vector<20x128xf32>, vector<128x128xf32>, vector<20x128xf32> -> vector<20x128xf32>
    %c0_22 = arith.constant 0 : index
    %c0_23 = arith.constant 0 : index
    %37 = vector.load %arg3[%c0_22, %c0_23] : memref<1x128xf32, #tpu.memory_space<vmem>>, vector<1x128xf32>
    %38 = vector.broadcast %37 : vector<1x128xf32> to vector<20x128xf32>
    %39 = arith.addf %36, %38 : vector<20x128xf32>
    %cst_24 = arith.constant 0.000000e+00 : f32
    %40 = vector.broadcast %cst_24 : f32 to vector<20x128xf32>
    %41 = arith.maximumf %39, %40 : vector<20x128xf32>
    %cst_25 = arith.constant 0.000000e+00 : f32
    %42 = vector.broadcast %cst_25 : f32 to vector<20x128xf32>
    %43 = arith.select %20, %41, %42 : vector<20x128xi1>, vector<20x128xf32>
    %c1_26 = arith.constant 1 : index
    %c256 = arith.constant 256 : index
    %44 = vector.load %arg7[%c1_26, %c256] : memref<26x512xf32, #tpu.memory_space<vmem>>, vector<20x128xf32>
    tpu.vector_store %arg7[%c1_26, %c256], %43 {strides = array<i32>} : memref<26x512xf32, #tpu.memory_space<vmem>>, vector<20x128xf32>,
    %c0_27 = arith.constant 0 : index
    %c2 = arith.constant 2 : index
    %c0_28 = arith.constant 0 : index
    %c0_29 = arith.constant 0 : index
    %45 = vector.load %arg1[%c0_27, %c2, %c0_28, %c0_29] : memref<1x4x20x128xf32, #tpu.memory_space<vmem>>, vector<1x1x20x128xf32>
    %46 = vector.shape_cast %45 : vector<1x1x20x128xf32> to vector<20x128xf32>
    %c0_30 = arith.constant 0 : index
    %c0_31 = arith.constant 0 : index
    %47 = vector.load %arg2[%c0_30, %c0_31] : memref<128x128xf32, #tpu.memory_space<vmem>>, vector<128x128xf32>
    %cst_32 = arith.constant dense<0.000000e+00> : vector<20x128xf32>
    %48 = tpu.matmul %46, %47, %cst_32 {dimension_numbers = #tpu.dot_dimension_numbers<[1], [0], [0], [1], [0, 0, 1, 1], [], []>} : vector<20x128xf32>, vector<128x128xf32>, vector<20x128xf32> -> vector<20x128xf32>
    %c0_33 = arith.constant 0 : index
    %c0_34 = arith.constant 0 : index
    %49 = vector.load %arg3[%c0_33, %c0_34] : memref<1x128xf32, #tpu.memory_space<vmem>>, vector<1x128xf32>
    %50 = vector.broadcast %49 : vector<1x128xf32> to vector<20x128xf32>
    %51 = arith.addf %48, %50 : vector<20x128xf32>
    %cst_35 = arith.constant 0.000000e+00 : f32
    %52 = vector.broadcast %cst_35 : f32 to vector<20x128xf32>
    %53 = arith.maximumf %51, %52 : vector<20x128xf32>
    %cst_36 = arith.constant 0.000000e+00 : f32
    %54 = vector.broadcast %cst_36 : f32 to vector<20x128xf32>
    %55 = arith.select %20, %53, %54 : vector<20x128xi1>, vector<20x128xf32>
    %c5 = arith.constant 5 : index
    %c128 = arith.constant 128 : index
    %56 = vector.load %arg7[%c5, %c128] : memref<26x512xf32, #tpu.memory_space<vmem>>, vector<20x128xf32>
    tpu.vector_store %arg7[%c5, %c128], %55 {strides = array<i32>} : memref<26x512xf32, #tpu.memory_space<vmem>>, vector<20x128xf32>,
    %c0_37 = arith.constant 0 : index
    %c3 = arith.constant 3 : index
    %c0_38 = arith.constant 0 : index
    %c0_39 = arith.constant 0 : index
    %57 = vector.load %arg1[%c0_37, %c3, %c0_38, %c0_39] : memref<1x4x20x128xf32, #tpu.memory_space<vmem>>, vector<1x1x20x128xf32>
    %58 = vector.shape_cast %57 : vector<1x1x20x128xf32> to vector<20x128xf32>
    %c0_40 = arith.constant 0 : index
    %c0_41 = arith.constant 0 : index
    %59 = vector.load %arg2[%c0_40, %c0_41] : memref<128x128xf32, #tpu.memory_space<vmem>>, vector<128x128xf32>
    %cst_42 = arith.constant dense<0.000000e+00> : vector<20x128xf32>
    %60 = tpu.matmul %58, %59, %cst_42 {dimension_numbers = #tpu.dot_dimension_numbers<[1], [0], [0], [1], [0, 0, 1, 1], [], []>} : vector<20x128xf32>, vector<128x128xf32>, vector<20x128xf32> -> vector<20x128xf32>
    %c0_43 = arith.constant 0 : index
    %c0_44 = arith.constant 0 : index
    %61 = vector.load %arg3[%c0_43, %c0_44] : memref<1x128xf32, #tpu.memory_space<vmem>>, vector<1x128xf32>
    %62 = vector.broadcast %61 : vector<1x128xf32> to vector<20x128xf32>
    %63 = arith.addf %60, %62 : vector<20x128xf32>
    %cst_45 = arith.constant 0.000000e+00 : f32
    %64 = vector.broadcast %cst_45 : f32 to vector<20x128xf32>
    %65 = arith.maximumf %63, %64 : vector<20x128xf32>
    %cst_46 = arith.constant 0.000000e+00 : f32
    %66 = vector.broadcast %cst_46 : f32 to vector<20x128xf32>
    %67 = arith.select %20, %65, %66 : vector<20x128xi1>, vector<20x128xf32>
    %c6 = arith.constant 6 : index
    %c0_47 = arith.constant 0 : index
    %68 = vector.load %arg7[%c6, %c0_47] : memref<26x512xf32, #tpu.memory_space<vmem>>, vector<20x128xf32>
    tpu.vector_store %arg7[%c6, %c0_47], %67 {strides = array<i32>} : memref<26x512xf32, #tpu.memory_space<vmem>>, vector<20x128xf32>,
    %cst_48 = arith.constant 0.000000e+00 : f32
    %69 = vector.broadcast %cst_48 : f32 to vector<20x128xf32>
    %c0_49 = arith.constant 0 : index
    %c0_50 = arith.constant 0 : index
    %70 = vector.load %arg7[%c0_49, %c0_50] : memref<26x512xf32, #tpu.memory_space<vmem>>, vector<20x128xf32>
    %c0_51 = arith.constant 0 : index
    %c0_52 = arith.constant 0 : index
    %c0_53 = arith.constant 0 : index
    %71 = vector.load %arg4[%c0_51, %c0_52, %c0_53] : memref<9x128x128xf32, #tpu.memory_space<vmem>>, vector<1x128x128xf32>
    %72 = vector.shape_cast %71 : vector<1x128x128xf32> to vector<128x128xf32>
    %cst_54 = arith.constant dense<0.000000e+00> : vector<20x128xf32>
    %73 = tpu.matmul %70, %72, %cst_54 {dimension_numbers = #tpu.dot_dimension_numbers<[1], [0], [0], [1], [0, 0, 1, 1], [], []>} : vector<20x128xf32>, vector<128x128xf32>, vector<20x128xf32> -> vector<20x128xf32>
    %74 = arith.addf %69, %73 : vector<20x128xf32>
    %c0_55 = arith.constant 0 : index
    %c128_56 = arith.constant 128 : index
    %75 = vector.load %arg7[%c0_55, %c128_56] : memref<26x512xf32, #tpu.memory_space<vmem>>, vector<20x128xf32>
    %c1_57 = arith.constant 1 : index
    %c0_58 = arith.constant 0 : index
    %c0_59 = arith.constant 0 : index
    %76 = vector.load %arg4[%c1_57, %c0_58, %c0_59] : memref<9x128x128xf32, #tpu.memory_space<vmem>>, vector<1x128x128xf32>
    %77 = vector.shape_cast %76 : vector<1x128x128xf32> to vector<128x128xf32>
    %cst_60 = arith.constant dense<0.000000e+00> : vector<20x128xf32>
    %78 = tpu.matmul %75, %77, %cst_60 {dimension_numbers = #tpu.dot_dimension_numbers<[1], [0], [0], [1], [0, 0, 1, 1], [], []>} : vector<20x128xf32>, vector<128x128xf32>, vector<20x128xf32> -> vector<20x128xf32>
    %79 = arith.addf %74, %78 : vector<20x128xf32>
    %c1_61 = arith.constant 1 : index
    %c0_62 = arith.constant 0 : index
    %80 = vector.load %arg7[%c1_61, %c0_62] : memref<26x512xf32, #tpu.memory_space<vmem>>, vector<20x128xf32>
    %c2_63 = arith.constant 2 : index
    %c0_64 = arith.constant 0 : index
    %c0_65 = arith.constant 0 : index
    %81 = vector.load %arg4[%c2_63, %c0_64, %c0_65] : memref<9x128x128xf32, #tpu.memory_space<vmem>>, vector<1x128x128xf32>
    %82 = vector.shape_cast %81 : vector<1x128x128xf32> to vector<128x128xf32>
    %cst_66 = arith.constant dense<0.000000e+00> : vector<20x128xf32>
    %83 = tpu.matmul %80, %82, %cst_66 {dimension_numbers = #tpu.dot_dimension_numbers<[1], [0], [0], [1], [0, 0, 1, 1], [], []>} : vector<20x128xf32>, vector<128x128xf32>, vector<20x128xf32> -> vector<20x128xf32>
    %84 = arith.addf %79, %83 : vector<20x128xf32>
    %c0_67 = arith.constant 0 : index
    %c256_68 = arith.constant 256 : index
    %85 = vector.load %arg7[%c0_67, %c256_68] : memref<26x512xf32, #tpu.memory_space<vmem>>, vector<20x128xf32>
    %c3_69 = arith.constant 3 : index
    %c0_70 = arith.constant 0 : index
    %c0_71 = arith.constant 0 : index
    %86 = vector.load %arg4[%c3_69, %c0_70, %c0_71] : memref<9x128x128xf32, #tpu.memory_space<vmem>>, vector<1x128x128xf32>
    %87 = vector.shape_cast %86 : vector<1x128x128xf32> to vector<128x128xf32>
    %cst_72 = arith.constant dense<0.000000e+00> : vector<20x128xf32>
    %88 = tpu.matmul %85, %87, %cst_72 {dimension_numbers = #tpu.dot_dimension_numbers<[1], [0], [0], [1], [0, 0, 1, 1], [], []>} : vector<20x128xf32>, vector<128x128xf32>, vector<20x128xf32> -> vector<20x128xf32>
    %89 = arith.addf %84, %88 : vector<20x128xf32>
    %c0_73 = arith.constant 0 : index
    %c384_74 = arith.constant 384 : index
    %90 = vector.load %arg7[%c0_73, %c384_74] : memref<26x512xf32, #tpu.memory_space<vmem>>, vector<20x128xf32>
    %c4 = arith.constant 4 : index
    %c0_75 = arith.constant 0 : index
    %c0_76 = arith.constant 0 : index
    %91 = vector.load %arg4[%c4, %c0_75, %c0_76] : memref<9x128x128xf32, #tpu.memory_space<vmem>>, vector<1x128x128xf32>
    %92 = vector.shape_cast %91 : vector<1x128x128xf32> to vector<128x128xf32>
    %cst_77 = arith.constant dense<0.000000e+00> : vector<20x128xf32>
    %93 = tpu.matmul %90, %92, %cst_77 {dimension_numbers = #tpu.dot_dimension_numbers<[1], [0], [0], [1], [0, 0, 1, 1], [], []>} : vector<20x128xf32>, vector<128x128xf32>, vector<20x128xf32> -> vector<20x128xf32>
    %94 = arith.addf %89, %93 : vector<20x128xf32>
    %c1_78 = arith.constant 1 : index
    %c256_79 = arith.constant 256 : index
    %95 = vector.load %arg7[%c1_78, %c256_79] : memref<26x512xf32, #tpu.memory_space<vmem>>, vector<20x128xf32>
    %c5_80 = arith.constant 5 : index
    %c0_81 = arith.constant 0 : index
    %c0_82 = arith.constant 0 : index
    %96 = vector.load %arg4[%c5_80, %c0_81, %c0_82] : memref<9x128x128xf32, #tpu.memory_space<vmem>>, vector<1x128x128xf32>
    %97 = vector.shape_cast %96 : vector<1x128x128xf32> to vector<128x128xf32>
    %cst_83 = arith.constant dense<0.000000e+00> : vector<20x128xf32>
    %98 = tpu.matmul %95, %97, %cst_83 {dimension_numbers = #tpu.dot_dimension_numbers<[1], [0], [0], [1], [0, 0, 1, 1], [], []>} : vector<20x128xf32>, vector<128x128xf32>, vector<20x128xf32> -> vector<20x128xf32>
    %99 = arith.addf %94, %98 : vector<20x128xf32>
    %c5_84 = arith.constant 5 : index
    %c0_85 = arith.constant 0 : index
    %100 = vector.load %arg7[%c5_84, %c0_85] : memref<26x512xf32, #tpu.memory_space<vmem>>, vector<20x128xf32>
    %c6_86 = arith.constant 6 : index
    %c0_87 = arith.constant 0 : index
    %c0_88 = arith.constant 0 : index
    %101 = vector.load %arg4[%c6_86, %c0_87, %c0_88] : memref<9x128x128xf32, #tpu.memory_space<vmem>>, vector<1x128x128xf32>
    %102 = vector.shape_cast %101 : vector<1x128x128xf32> to vector<128x128xf32>
    %cst_89 = arith.constant dense<0.000000e+00> : vector<20x128xf32>
    %103 = tpu.matmul %100, %102, %cst_89 {dimension_numbers = #tpu.dot_dimension_numbers<[1], [0], [0], [1], [0, 0, 1, 1], [], []>} : vector<20x128xf32>, vector<128x128xf32>, vector<20x128xf32> -> vector<20x128xf32>
    %104 = arith.addf %99, %103 : vector<20x128xf32>
    %c5_90 = arith.constant 5 : index
    %c128_91 = arith.constant 128 : index
    %105 = vector.load %arg7[%c5_90, %c128_91] : memref<26x512xf32, #tpu.memory_space<vmem>>, vector<20x128xf32>
    %c7 = arith.constant 7 : index
    %c0_92 = arith.constant 0 : index
    %c0_93 = arith.constant 0 : index
    %106 = vector.load %arg4[%c7, %c0_92, %c0_93] : memref<9x128x128xf32, #tpu.memory_space<vmem>>, vector<1x128x128xf32>
    %107 = vector.shape_cast %106 : vector<1x128x128xf32> to vector<128x128xf32>
    %cst_94 = arith.constant dense<0.000000e+00> : vector<20x128xf32>
    %108 = tpu.matmul %105, %107, %cst_94 {dimension_numbers = #tpu.dot_dimension_numbers<[1], [0], [0], [1], [0, 0, 1, 1], [], []>} : vector<20x128xf32>, vector<128x128xf32>, vector<20x128xf32> -> vector<20x128xf32>
    %109 = arith.addf %104, %108 : vector<20x128xf32>
    %c6_95 = arith.constant 6 : index
    %c0_96 = arith.constant 0 : index
    %110 = vector.load %arg7[%c6_95, %c0_96] : memref<26x512xf32, #tpu.memory_space<vmem>>, vector<20x128xf32>
    %c8 = arith.constant 8 : index
    %c0_97 = arith.constant 0 : index
    %c0_98 = arith.constant 0 : index
    %111 = vector.load %arg4[%c8, %c0_97, %c0_98] : memref<9x128x128xf32, #tpu.memory_space<vmem>>, vector<1x128x128xf32>
    %112 = vector.shape_cast %111 : vector<1x128x128xf32> to vector<128x128xf32>
    %cst_99 = arith.constant dense<0.000000e+00> : vector<20x128xf32>
    %113 = tpu.matmul %110, %112, %cst_99 {dimension_numbers = #tpu.dot_dimension_numbers<[1], [0], [0], [1], [0, 0, 1, 1], [], []>} : vector<20x128xf32>, vector<128x128xf32>, vector<20x128xf32> -> vector<20x128xf32>
    %114 = arith.addf %109, %113 : vector<20x128xf32>
    %c0_100 = arith.constant 0 : index
    %c0_101 = arith.constant 0 : index
    %115 = vector.load %arg5[%c0_100, %c0_101] : memref<1x128xf32, #tpu.memory_space<vmem>>, vector<1x128xf32>
    %116 = vector.broadcast %115 : vector<1x128xf32> to vector<20x128xf32>
    %117 = arith.addf %114, %116 : vector<20x128xf32>
    %cst_102 = arith.constant 0.000000e+00 : f32
    %118 = vector.broadcast %cst_102 : f32 to vector<20x128xf32>
    %119 = arith.maximumf %117, %118 : vector<20x128xf32>
    %c0_103 = arith.constant 0 : index
    %c0_104 = arith.constant 0 : index
    %c0_105 = arith.constant 0 : index
    %120 = vector.load %arg6[%c0_103, %c0_104, %c0_105] : memref<1x20x128xf32, #tpu.memory_space<vmem>>, vector<1x20x128xf32>
    %121 = vector.shape_cast %120 : vector<1x20x128xf32> to vector<20x128xf32>
    %122 = vector.shape_cast %119 : vector<20x128xf32> to vector<1x20x128xf32>
    tpu.vector_store %arg6[%c0_103, %c0_104, %c0_105], %122 {strides = array<i32>} : memref<1x20x128xf32, #tpu.memory_space<vmem>>, vector<1x20x128xf32>,
    return
  }
  func.func @transform_0(%arg0: i32) -> (i32, i32, i32, i32) {
    %c0_i32 = arith.constant 0 : i32
    %c0_i32_0 = arith.constant 0 : i32
    %c0_i32_1 = arith.constant 0 : i32
    %c0_i32_2 = arith.constant 0 : i32
    return %arg0, %c0_i32, %c0_i32_0, %c0_i32_1 : i32, i32, i32, i32
  }
  func.func @transform_1(%arg0: i32) -> (i32, i32) {
    %c0_i32 = arith.constant 0 : i32
    %c0_i32_0 = arith.constant 0 : i32
    %c0_i32_1 = arith.constant 0 : i32
    return %c0_i32, %c0_i32_0 : i32, i32
  }
  func.func @transform_2(%arg0: i32) -> (i32, i32) {
    %c0_i32 = arith.constant 0 : i32
    %c0_i32_0 = arith.constant 0 : i32
    %c0_i32_1 = arith.constant 0 : i32
    return %c0_i32, %c0_i32_0 : i32, i32
  }
  func.func @transform_3(%arg0: i32) -> (i32, i32, i32) {
    %c0_i32 = arith.constant 0 : i32
    %c0_i32_0 = arith.constant 0 : i32
    %c0_i32_1 = arith.constant 0 : i32
    %c0_i32_2 = arith.constant 0 : i32
    return %c0_i32, %c0_i32_0, %c0_i32_1 : i32, i32, i32
  }
  func.func @transform_4(%arg0: i32) -> (i32, i32) {
    %c0_i32 = arith.constant 0 : i32
    %c0_i32_0 = arith.constant 0 : i32
    %c0_i32_1 = arith.constant 0 : i32
    return %c0_i32, %c0_i32_0 : i32, i32
  }
  func.func @transform_5(%arg0: i32) -> (i32, i32, i32) {
    %c0_i32 = arith.constant 0 : i32
    %c0_i32_0 = arith.constant 0 : i32
    %c0_i32_1 = arith.constant 0 : i32
    return %arg0, %c0_i32, %c0_i32_0 : i32, i32, i32
  }
}

</mosaic_0001>

<llo_original>
// kernel: feature_extractor_modified.1
$region0: #{feature_extractor_modified.1}
  #allocation0 [shape = 'u32[]', space=smem, size = 0x4, offset = 0x4, fixed_abs, tag = 'smem constant byte address 0x4 - core index']
  #allocation1 [shape = 'u32[144,128]{1,0:T(1,128)}', space=vmem, size = 0x12000, scoped, tag = 'internal scratch']
  #allocation2 [shape = 'f32[26,512]{1,0:T(8,128)}', space=vmem, size = 0x10000, scoped, tag = 'scratch operand']
  %s0 = inlined_call_operand.vmem [shape: f32[2,4,20,128], index: 0, kind: input, shape index: {}]
  %s1 = inlined_call_operand.vmem [shape: f32[128,128], index: 1, kind: input, shape index: {}]
  %s2 = inlined_call_operand.vmem [shape: f32[1,128], index: 2, kind: input, shape index: {}]
  %s3 = inlined_call_operand.vmem [shape: f32[9,128,128], index: 3, kind: input, shape index: {}]
  %s4 = inlined_call_operand.vmem [shape: f32[1,128], index: 4, kind: input, shape index: {}]
  %s5 = inlined_call_operand.vmem [shape: f32[2,20,128], index: 5, kind: output, shape index: {}]
  %s6 = sld [smem:[#allocation0]]
  $region53: #{feature_extractor_modified.1} parent=0
    _
  %s8 = ssub.s32 1, %s6
  %s9 = scalar_select 0, %s8, %s6
  loop: start=0, step=1, limit=4
  $region2: #{feature_extractor_modified.1} parent=0 // loop_pre_header
    _
  $region3: #{feature_extractor_modified.1} parent=0 // loop_header
    %s11 = sphi 0, %s15
    %p12 = scmp.ge.s32.totalorder %s11, 4
    %s21 = sphi 0, %s23
    %s24 = sphi 0, %s21
    %s25 = sphi 0, %s24
    %s41 = sphi 0, %s25
    %s45 = sphi 0, %s45
    %s47 = sphi 0, %s45
    %s48 = sphi 0, %s47
    %s62 = sphi 0, %s48
    %s66 = sphi 0, %s66
    %s68 = sphi 0, %s66
    %s69 = sphi 0, %s68
    %s83 = sphi 0, %s69
    %s87 = sphi 0, %s87
    %s89 = sphi 0, %s87
    %s90 = sphi 0, %s89
    %s104 = sphi 0, %s90
    %s108 = sphi 0, %s108
    %s110 = sphi 0, %s108
    %s111 = sphi 0, %s110
    %s125 = sphi 0, %s111
    %s131 = sphi 0, %s133
    %s134 = sphi 0, %s131
    %s135 = sphi 0, %s134
    %s151 = sphi 0, %s135
  $region4: #{feature_extractor_modified.1} parent=0 // loop_header_branch
    %14 = sbr.rel (%p12) target = $region8
  $region5: #{feature_extractor_modified.1} parent=0 // loop_body
    %s16 = ssub.s32 %s11, 1
    %s17 = ssub.s32 %s11, 2
    %s18 = sadd.s32 %s11, 1
    %s19 = ssub.s32 %s11, %s18
    %p20 = scmp.eq.s32.totalorder %s19, 0
    %s22 = sadd.s32 %s21, 1
    %s23 = scalar_select %p20, %s21, %s22
    %p26 = pneg %p20
    %p27 = scmp.eq.s32.totalorder %s11, 1
    %p28 = por %p26, %p27
    %p29 = scmp.ne.s32.totalorder %s21, %s24
    %p30 = scmp.eq.s32.totalorder %s11, 0
    %p31 = por %p29, %p30
    %p32 = scmp.ne.s32.totalorder %s21, %s24
    %p33 = scmp.eq.s32.totalorder %s16, 1
    %p34 = por %p32, %p33
    %p35 = scmp.ne.s32.totalorder %s24, %s25
    %p36 = scmp.eq.s32.totalorder %s16, 0
    %p37 = por %p35, %p36
    %p38 = scmp.ne.s32.totalorder %s24, %s25
    %p39 = scmp.eq.s32.totalorder %s17, 1
    %p40 = por %p38, %p39
    %p42 = scmp.ne.s32.totalorder %s25, %s41
    %p43 = scmp.eq.s32.totalorder %s17, 0
    %p44 = por %p42, %p43
    %s46 = sadd.s32 %s45, 1
    %p49 = scmp.eq.s32.totalorder %s11, 1
    %p50 = scmp.ne.s32.totalorder %s45, %s47
    %p51 = scmp.eq.s32.totalorder %s11, 0
    %p52 = por %p50, %p51
    %p53 = scmp.ne.s32.totalorder %s45, %s47
    %p54 = scmp.eq.s32.totalorder %s16, 1
    %p55 = por %p53, %p54
    %p56 = scmp.ne.s32.totalorder %s47, %s48
    %p57 = scmp.eq.s32.totalorder %s16, 0
    %p58 = por %p56, %p57
    %p59 = scmp.ne.s32.totalorder %s47, %s48
    %p60 = scmp.eq.s32.totalorder %s17, 1
    %p61 = por %p59, %p60
    %p63 = scmp.ne.s32.totalorder %s48, %s62
    %p64 = scmp.eq.s32.totalorder %s17, 0
    %p65 = por %p63, %p64
    %s67 = sadd.s32 %s66, 1
    %p70 = scmp.eq.s32.totalorder %s11, 1
    %p71 = scmp.ne.s32.totalorder %s66, %s68
    %p72 = scmp.eq.s32.totalorder %s11, 0
    %p73 = por %p71, %p72
    %p74 = scmp.ne.s32.totalorder %s66, %s68
    %p75 = scmp.eq.s32.totalorder %s16, 1
    %p76 = por %p74, %p75
    %p77 = scmp.ne.s32.totalorder %s68, %s69
    %p78 = scmp.eq.s32.totalorder %s16, 0
    %p79 = por %p77, %p78
    %p80 = scmp.ne.s32.totalorder %s68, %s69
    %p81 = scmp.eq.s32.totalorder %s17, 1
    %p82 = por %p80, %p81
    %p84 = scmp.ne.s32.totalorder %s69, %s83
    %p85 = scmp.eq.s32.totalorder %s17, 0
    %p86 = por %p84, %p85
    %s88 = sadd.s32 %s87, 1
    %p91 = scmp.eq.s32.totalorder %s11, 1
    %p92 = scmp.ne.s32.totalorder %s87, %s89
    %p93 = scmp.eq.s32.totalorder %s11, 0
    %p94 = por %p92, %p93
    %p95 = scmp.ne.s32.totalorder %s87, %s89
    %p96 = scmp.eq.s32.totalorder %s16, 1
    %p97 = por %p95, %p96
    %p98 = scmp.ne.s32.totalorder %s89, %s90
    %p99 = scmp.eq.s32.totalorder %s16, 0
    %p100 = por %p98, %p99
    %p101 = scmp.ne.s32.totalorder %s89, %s90
    %p102 = scmp.eq.s32.totalorder %s17, 1
    %p103 = por %p101, %p102
    %p105 = scmp.ne.s32.totalorder %s90, %s104
    %p106 = scmp.eq.s32.totalorder %s17, 0
    %p107 = por %p105, %p106
    %s109 = sadd.s32 %s108, 1
    %p112 = scmp.eq.s32.totalorder %s11, 1
    %p113 = scmp.ne.s32.totalorder %s108, %s110
    %p114 = scmp.eq.s32.totalorder %s11, 0
    %p115 = por %p113, %p114
    %p116 = scmp.ne.s32.totalorder %s108, %s110
    %p117 = scmp.eq.s32.totalorder %s16, 1
    %p118 = por %p116, %p117
    %p119 = scmp.ne.s32.totalorder %s110, %s111
    %p120 = scmp.eq.s32.totalorder %s16, 0
    %p121 = por %p119, %p120
    %p122 = scmp.ne.s32.totalorder %s110, %s111
    %p123 = scmp.eq.s32.totalorder %s17, 1
    %p124 = por %p122, %p123
    %p126 = scmp.ne.s32.totalorder %s111, %s125
    %p127 = scmp.eq.s32.totalorder %s17, 0
    %p128 = por %p126, %p127
    %s129 = ssub.s32 %s11, %s18
    %p130 = scmp.eq.s32.totalorder %s129, 0
    %s132 = sadd.s32 %s131, 1
    %s133 = scalar_select %p130, %s131, %s132
    %p136 = pneg %p130
    %p137 = scmp.eq.s32.totalorder %s11, 1
    %p138 = por %p136, %p137
    %p139 = scmp.ne.s32.totalorder %s131, %s134
    %p140 = scmp.eq.s32.totalorder %s11, 0
    %p141 = por %p139, %p140
    %p142 = scmp.ne.s32.totalorder %s131, %s134
    %p143 = scmp.eq.s32.totalorder %s16, 1
    %p144 = por %p142, %p143
    %p145 = scmp.ne.s32.totalorder %s134, %s135
    %p146 = scmp.eq.s32.totalorder %s16, 0
    %p147 = por %p145, %p146
    %p148 = scmp.ne.s32.totalorder %s134, %s135
    %p149 = scmp.eq.s32.totalorder %s17, 1
    %p150 = por %p148, %p149
    %p152 = scmp.ne.s32.totalorder %s135, %s151
    %p153 = scmp.eq.s32.totalorder %s17, 0
    %p154 = por %p152, %p153
    %p155 = scmp.le.s32.totalorder 1, %s11
    %p156 = scmp.lt.s32.totalorder %s11, 3
    %p157 = pnand %p155, %p156
    %p158 = pneg %p157
    // Predicated region
    $region9: #{feature_extractor_modified.1} parent=5 // pred_check
      _
    $region10: #{feature_extractor_modified.1} parent=5 // pred_check_branch
      %160 = sbr.rel (%p157) target = $region12
    $region11: #{feature_extractor_modified.1} parent=5 // pred_region
      %s161 = ssub.s32 %s11, 1
      // Predicated region
      $region13: #{feature_extractor_modified.1} parent=11 // pred_check
        %p162 = pneg %p58
      $region14: #{feature_extractor_modified.1} parent=11 // pred_check_branch
        %164 = sbr.rel (%p162) target = $region16
      $region15: #{feature_extractor_modified.1} parent=11 // pred_region
        _
      $region16: #{feature_extractor_modified.1} parent=11 // pred_fallthru
        _
      // Predicated region
      $region17: #{feature_extractor_modified.1} parent=11 // pred_check
        %p165 = pneg %p79
      $region18: #{feature_extractor_modified.1} parent=11 // pred_check_branch
        %167 = sbr.rel (%p165) target = $region20
      $region19: #{feature_extractor_modified.1} parent=11 // pred_region
        _
      $region20: #{feature_extractor_modified.1} parent=11 // pred_fallthru
        _
      // Predicated region
      $region21: #{feature_extractor_modified.1} parent=11 // pred_check
        %p168 = pneg %p100
      $region22: #{feature_extractor_modified.1} parent=11 // pred_check_branch
        %170 = sbr.rel (%p168) target = $region24
      $region23: #{feature_extractor_modified.1} parent=11 // pred_region
        _
      $region24: #{feature_extractor_modified.1} parent=11 // pred_fallthru
        _
      // Predicated region
      $region25: #{feature_extractor_modified.1} parent=11 // pred_check
        %p171 = pneg %p121
      $region26: #{feature_extractor_modified.1} parent=11 // pred_check_branch
        %173 = sbr.rel (%p171) target = $region28
      $region27: #{feature_extractor_modified.1} parent=11 // pred_region
        _
      $region28: #{feature_extractor_modified.1} parent=11 // pred_fallthru
        _
    $region12: #{feature_extractor_modified.1} parent=5 // pred_fallthru
      _
    %p174 = scmp.lt.s32.totalorder %s11, 2
    // Predicated region
    $region29: #{feature_extractor_modified.1} parent=5 // pred_check
      %p175 = pneg %p174
    $region30: #{feature_extractor_modified.1} parent=5 // pred_check_branch
      %177 = sbr.rel (%p175) target = $region32
    $region31: #{feature_extractor_modified.1} parent=5 // pred_region
      // Predicated region
      $region33: #{feature_extractor_modified.1} parent=31 // pred_check
        %p178 = pneg %p31
      $region34: #{feature_extractor_modified.1} parent=31 // pred_check_branch
        %180 = sbr.rel (%p178) target = $region36
      $region35: #{feature_extractor_modified.1} parent=31 // pred_region
        %p181 = scmp.lt.s32.totalorder %s11, 1
        %s182 = scalar_select %p181, %s11, 1
        %s183 = smul.addr %s182, 12
        %s184 = smul.addr %s183, 8
        %s185 = scalar_lea.vmem %s0, %s184
      $region36: #{feature_extractor_modified.1} parent=31 // pred_fallthru
        _
    $region32: #{feature_extractor_modified.1} parent=5 // pred_fallthru
      _
    %p186 = scmp.le.s32.totalorder 1, %s11
    %p187 = scmp.lt.s32.totalorder %s11, 3
    %p188 = pnand %p186, %p187
    %p189 = pneg %p188
    // Predicated region
    $region37: #{feature_extractor_modified.1} parent=5 // pred_check
      _
    $region38: #{feature_extractor_modified.1} parent=5 // pred_check_branch
      %191 = sbr.rel (%p188) target = $region40
    $region39: #{feature_extractor_modified.1} parent=5 // pred_region
      %s192 = ssub.s32 %s11, 1
      %p193 = scmp.lt.s32.totalorder %s16, 1
      %s194 = scalar_select %p193, %s16, 1
      %s195 = smul.addr %s194, 12
      %s196 = smul.addr %s195, 8
      %s197 = scalar_lea.vmem %s0, %s196
      %p198 = pneg %p37
      %p199 = pneg %p34
      %p200 = pneg %p58
      %p201 = pneg %p55
      %p202 = pneg %p79
      %p203 = pneg %p76
      %p204 = pneg %p100
      %p205 = pneg %p97
      %p206 = pneg %p121
      %p207 = pneg %p118
      %p208 = pneg %p147
      %p209 = pneg %p144
      %p210 = scmp.lt.s32.totalorder %s16, 1
      %s211 = scalar_select %p210, %s16, 1
      %s212 = smul.addr %s211, 3
      %s213 = smul.addr %s212, 8
      %s214 = scalar_lea.vmem %s5, %s213
      %p215 = scmp.lt.s32.totalorder %s16, 1
      %s216 = scalar_select %p215, %s16, 1
      %s217 = smul.addr %s216, 12
      %s218 = smul.addr %s217, 8
      %s219 = scalar_lea.vmem %s0, %s218
      %p220 = scmp.lt.s32.totalorder %s16, 1
      %s221 = scalar_select %p220, %s16, 1
      %s222 = smul.addr %s221, 3
      %s223 = smul.addr %s222, 8
      %s224 = scalar_lea.vmem %s5, %s223
      %225 = vst [vmem:[#allocation2] sm:$0xff] 0.0
      %226 = vst [vmem:[#allocation2 + $0x8] sm:$0xff] 0.0
      %227 = vst [vmem:[#allocation2 + $0x10] sm:$0xff] 0.0
      %228 = vst [vmem:[#allocation2 + $0x18] sm:$0xff] 0.0
      %229 = vst [vmem:[#allocation2 + $0x20] sm:$0xff] 0.0
      %230 = vst [vmem:[#allocation2 + $0x28] sm:$0xff] 0.0
      %231 = vst [vmem:[#allocation2 + $0x30] sm:$0xff] 0.0
      %232 = vst [vmem:[#allocation2 + $0x38] sm:$0xff] 0.0
      %233 = vst [vmem:[#allocation2 + $0x40] sm:$0xff] 0.0
      %234 = vst [vmem:[#allocation2 + $0x48] sm:$0xff] 0.0
      %235 = vst [vmem:[#allocation2 + $0x50] sm:$0xff] 0.0
      %236 = vst [vmem:[#allocation2 + $0x58] sm:$0xff] 0.0
      %237 = vst [vmem:[#allocation2 + $0x60] sm:$0x3] 0.0
      %238 = vst [vmem:[#allocation2 + $0x68] sm:$0x3] 0.0
      %239 = vst [vmem:[#allocation2 + $0x70] sm:$0x3] 0.0
      %240 = vst [vmem:[#allocation2 + $0x78] sm:$0x3] 0.0
      %v241 = vlaneseq
      %v242 = vshrl.u32 %v241, 7
      %v243 = vadd.s32 %v242, 8
      %v244 = vadd.s32 %v242, 16
      %vm245 = vcmp.lt.s32.totalorder %v242, 0
      %v246 = vsub.s32 0, %v242
      %v247 = vsel %vm245, %v246, %v242
      %v248 = vmul.u32.u64.compose %v247, 3435973837
      %v249 = vextract.low.u32 %v248
      %v250 = vextract.high.u32 %v248
      %v251 = vshrl.u32 %v250, 2
      %v252 = vmul.u32 %v251, 5
      %v253 = vsub.s32 %v247, %v252
      %v254 = vsub.s32 0, %v253
      %v255 = vsel %vm245, %v254, %v253
      %vm256 = vcmp.lt.s32.totalorder %v243, 0
      %v257 = vsub.s32 0, %v243
      %v258 = vsel %vm256, %v257, %v243
      %v259 = vmul.u32.u64.compose %v258, 3435973837
      %v260 = vextract.low.u32 %v259
      %v261 = vextract.high.u32 %v259
      %v262 = vshrl.u32 %v261, 2
      %v263 = vmul.u32 %v262, 5
      %v264 = vsub.s32 %v258, %v263
      %v265 = vsub.s32 0, %v264
      %v266 = vsel %vm256, %v265, %v264
      %vm267 = vcmp.lt.s32.totalorder %v244, 0
      %v268 = vsub.s32 0, %v244
      %v269 = vsel %vm267, %v268, %v244
      %v270 = vmul.u32.u64.compose %v269, 3435973837
      %v271 = vextract.low.u32 %v270
      %v272 = vextract.high.u32 %v270
      %v273 = vshrl.u32 %v272, 2
      %v274 = vmul.u32 %v273, 5
      %v275 = vsub.s32 %v269, %v274
      %v276 = vsub.s32 0, %v275
      %v277 = vsel %vm267, %v276, %v275
      %vm278 = vcmp.ne.s32.totalorder %v255, 0
      %vm279 = vcmp.ne.s32.totalorder %v266, 0
      %vm280 = vcmp.ne.s32.totalorder %v277, 0
      %vm281 = vcmp.lt.s32.totalorder %v255, 0
      %vm282 = vcmp.lt.s32.totalorder %v266, 0
      %vm283 = vcmp.lt.s32.totalorder %v277, 0
      %vm284 = vmand %vm281, %vm278
      %vm285 = vmand %vm282, %vm279
      %vm286 = vmand %vm283, %vm280
      %v287 = vadd.s32 %v255, 5
      %v288 = vadd.s32 %v266, 5
      %v289 = vadd.s32 %v277, 5
      %v290 = vsel %vm284, %v287, %v255
      %v291 = vsel %vm285, %v288, %v266
      %v292 = vsel %vm286, %v289, %v277
      %vm293 = vcmp.lt.s32.totalorder %v290, 4
      %vm294 = vcmp.lt.s32.totalorder %v291, 4
      %vm295 = vcmp.lt.s32.totalorder %v292, 4
      %v296 = vld [vmem:[%s219] sm:$0xff]
      %v297 = vld [vmem:[%s219 + $0x8] sm:$0xff]
      %v298 = vld [vmem:[%s219 + $0x10] sm:$0xf]
      %v299 = vld [vmem:[%s1] sm:$0xff]
      %v300 = vld [vmem:[%s1 + $0x8] sm:$0xff]
      %v301 = vld [vmem:[%s1 + $0x10] sm:$0xff]
      %v302 = vld [vmem:[%s1 + $0x18] sm:$0xff]
      %v303 = vld [vmem:[%s1 + $0x20] sm:$0xff]
      %v304 = vld [vmem:[%s1 + $0x28] sm:$0xff]
      %v305 = vld [vmem:[%s1 + $0x30] sm:$0xff]
      %v306 = vld [vmem:[%s1 + $0x38] sm:$0xff]
      %v307 = vld [vmem:[%s1 + $0x40] sm:$0xff]
      %v308 = vld [vmem:[%s1 + $0x48] sm:$0xff]
      %v309 = vld [vmem:[%s1 + $0x50] sm:$0xff]
      %v310 = vld [vmem:[%s1 + $0x58] sm:$0xff]
      %v311 = vld [vmem:[%s1 + $0x60] sm:$0xff]
      %v312 = vld [vmem:[%s1 + $0x68] sm:$0xff]
      %v313 = vld [vmem:[%s1 + $0x70] sm:$0xff]
      %v314 = vld [vmem:[%s1 + $0x78] sm:$0xff]
      %v315 = vld [vmem:[%s2] sm:$0x1]
      %v317 = vlaneseq
      %v318 = vshrl.u32 %v317, 7
      %v319 = vsub.s32 0, %v318
      %v320 = vrot.slane %v315, %v319
      %322 = vmatprep.subr.mxu0 0.0
      %323 = vmatpush1.msra.mxu0 %v299
      %324 = vmatprep.subr.mxu0 0.0
      %325 = vmatpush1.msra.mxu0 %v300
      %326 = vmatprep.subr.mxu0 0.0
      %327 = vmatpush1.msra.mxu0 %v301
      %328 = vmatprep.subr.mxu0 0.0
      %329 = vmatpush1.msra.mxu0 %v302
      %330 = vmatprep.subr.mxu0 0.0
      %331 = vmatpush1.msra.mxu0 %v303
      %332 = vmatprep.subr.mxu0 0.0
      %333 = vmatpush1.msra.mxu0 %v304
      %334 = vmatprep.subr.mxu0 0.0
      %335 = vmatpush1.msra.mxu0 %v305
      %336 = vmatprep.subr.mxu0 0.0
      %337 = vmatpush1.msra.mxu0 %v306
      %338 = vmatprep.subr.mxu0 0.0
      %339 = vmatpush1.msra.mxu0 %v307
      %340 = vmatprep.subr.mxu0 0.0
      %341 = vmatpush1.msra.mxu0 %v308
      %342 = vmatprep.subr.mxu0 0.0
      %343 = vmatpush1.msra.mxu0 %v309
      %344 = vmatprep.subr.mxu0 0.0
      %345 = vmatpush1.msra.mxu0 %v310
      %346 = vmatprep.subr.mxu0 0.0
      %347 = vmatpush1.msra.mxu0 %v311
      %348 = vmatprep.subr.mxu0 0.0
      %349 = vmatpush1.msra.mxu0 %v312
      %350 = vmatprep.subr.mxu0 0.0
      %351 = vmatpush1.msra.mxu0 %v313
      %352 = vmatprep.subr.mxu0 0.0
      %353 = vmatpush1.msra.mxu0 %v314
      %354 = vmatprep.subr.mxu0 0.0
      %355 = vmatpush1.msra.mxu0 0.0
      %356 = vmatprep.subr.mxu0 0.0
      %357 = vmatpush1.msra.mxu0 0.0
      %358 = vmatprep.subr.mxu0 0.0
      %359 = vmatpush1.msra.mxu0 0.0
      %360 = vmatprep.subr.mxu0 0.0
      %361 = vmatpush1.msra.mxu0 0.0
      %362 = vmatprep.subr.mxu0 0.0
      %363 = vmatpush1.msra.mxu0 0.0
      %364 = vmatprep.subr.mxu0 0.0
      %365 = vmatpush1.msra.mxu0 0.0
      %366 = vmatprep.subr.mxu0 0.0
      %367 = vmatpush1.msra.mxu0 0.0
      %368 = vmatprep.subr.mxu0 0.0
      %369 = vmatpush1.msra.mxu0 0.0
      %370 = vmatprep.subr.mxu0 0.0
      %371 = vmatpush1.msra.mxu0 0.0
      %372 = vmatprep.subr.mxu0 0.0
      %373 = vmatpush1.msra.mxu0 0.0
      %374 = vmatprep.subr.mxu0 0.0
      %375 = vmatpush1.msra.mxu0 0.0
      %376 = vmatprep.subr.mxu0 0.0
      %377 = vmatpush1.msra.mxu0 0.0
      %378 = vmatprep.subr.mxu0 0.0
      %379 = vmatpush1.msra.mxu0 0.0
      %380 = vmatprep.subr.mxu0 0.0
      %381 = vmatpush1.msra.mxu0 0.0
      %382 = vmatprep.subr.mxu0 0.0
      %383 = vmatpush1.msra.mxu0 0.0
      %384 = vmatprep.subr.mxu0 0.0
      %385 = vmatpush1.msra.mxu0 0.0
      %386 = vmatprep.mubr.f32.mxu0 0.0
      %387 = vmatmul.mubr.f32.gmra.mrb[0].mxu0 %v296
      %v388 = vpop.f32.mrb[0].mxu0
      %v389 = vadd.f32 %v320, %v388
      %v390 = vpop.f32.mrb[0].mxu0
      %391 = vmatprep.mubr.f32.mxu0 0.0
      %392 = vmatmul.mubr.f32.gmra.mrb[0].mxu0 %v297
      %v393 = vpop.f32.mrb[0].mxu0
      %v394 = vadd.f32 %v320, %v393
      %v395 = vpop.f32.mrb[0].mxu0
      %396 = vmatprep.mubr.f32.mxu0 0.0
      %397 = vmatmul.mubr.f32.gmra.mrb[0].mxu0 %v298
      %v398 = vpop.f32.mrb[0].mxu0
      %v399 = vadd.f32 %v320, %v398
      %v400 = vpop.f32.mrb[0].mxu0
      %401 = vdwg.mxu0
      %v402 = vmax.f32 %v389, 0.0
      %v403 = vmax.f32 %v394, 0.0
      %v404 = vmax.f32 %v399, 0.0
      %v405 = vsel %vm293, %v402, 0.0
      %v406 = vsel %vm294, %v403, 0.0
      %v407 = vsel %vm295, %v404, 0.0
      %408 = vst [vmem:[#allocation2 + $0x18] sm:$0xff] %v405
      %409 = vst [vmem:[#allocation2 + $0x38] sm:$0xff] %v406
      %410 = vst [vmem:[#allocation2 + $0x58] sm:$0xf] %v407
      %s411 = scalar_lea.vmem %s219, 24
      %v412 = vld [vmem:[%s411] sm:$0xff]
      %v413 = vld [vmem:[%s411 + $0x8] sm:$0xff]
      %v414 = vld [vmem:[%s411 + $0x10] sm:$0xf]
      %v415 = vld [vmem:[%s1] sm:$0xff]
      %v416 = vld [vmem:[%s1 + $0x8] sm:$0xff]
      %v417 = vld [vmem:[%s1 + $0x10] sm:$0xff]
      %v418 = vld [vmem:[%s1 + $0x18] sm:$0xff]
      %v419 = vld [vmem:[%s1 + $0x20] sm:$0xff]
      %v420 = vld [vmem:[%s1 + $0x28] sm:$0xff]
      %v421 = vld [vmem:[%s1 + $0x30] sm:$0xff]
      %v422 = vld [vmem:[%s1 + $0x38] sm:$0xff]
      %v423 = vld [vmem:[%s1 + $0x40] sm:$0xff]
      %v424 = vld [vmem:[%s1 + $0x48] sm:$0xff]
      %v425 = vld [vmem:[%s1 + $0x50] sm:$0xff]
      %v426 = vld [vmem:[%s1 + $0x58] sm:$0xff]
      %v427 = vld [vmem:[%s1 + $0x60] sm:$0xff]
      %v428 = vld [vmem:[%s1 + $0x68] sm:$0xff]
      %v429 = vld [vmem:[%s1 + $0x70] sm:$0xff]
      %v430 = vld [vmem:[%s1 + $0x78] sm:$0xff]
      %v431 = vld [vmem:[%s2] sm:$0x1]
      %v433 = vlaneseq
      %v434 = vshrl.u32 %v433, 7
      %v435 = vsub.s32 0, %v434
      %v436 = vrot.slane %v431, %v435
      %438 = vmatprep.subr.mxu0 0.0
      %439 = vmatpush1.msra.mxu0 %v415
      %440 = vmatprep.subr.mxu0 0.0
      %441 = vmatpush1.msra.mxu0 %v416
      %442 = vmatprep.subr.mxu0 0.0
      %443 = vmatpush1.msra.mxu0 %v417
      %444 = vmatprep.subr.mxu0 0.0
      %445 = vmatpush1.msra.mxu0 %v418
      %446 = vmatprep.subr.mxu0 0.0
      %447 = vmatpush1.msra.mxu0 %v419
      %448 = vmatprep.subr.mxu0 0.0
      %449 = vmatpush1.msra.mxu0 %v420
      %450 = vmatprep.subr.mxu0 0.0
      %451 = vmatpush1.msra.mxu0 %v421
      %452 = vmatprep.subr.mxu0 0.0
      %453 = vmatpush1.msra.mxu0 %v422
      %454 = vmatprep.subr.mxu0 0.0
      %455 = vmatpush1.msra.mxu0 %v423
      %456 = vmatprep.subr.mxu0 0.0
      %457 = vmatpush1.msra.mxu0 %v424
      %458 = vmatprep.subr.mxu0 0.0
      %459 = vmatpush1.msra.mxu0 %v425
      %460 = vmatprep.subr.mxu0 0.0
      %461 = vmatpush1.msra.mxu0 %v426
      %462 = vmatprep.subr.mxu0 0.0
      %463 = vmatpush1.msra.mxu0 %v427
      %464 = vmatprep.subr.mxu0 0.0
      %465 = vmatpush1.msra.mxu0 %v428
      %466 = vmatprep.subr.mxu0 0.0
      %467 = vmatpush1.msra.mxu0 %v429
      %468 = vmatprep.subr.mxu0 0.0
      %469 = vmatpush1.msra.mxu0 %v430
      %470 = vmatprep.subr.mxu0 0.0
      %471 = vmatpush1.msra.mxu0 0.0
      %472 = vmatprep.subr.mxu0 0.0
      %473 = vmatpush1.msra.mxu0 0.0
      %474 = vmatprep.subr.mxu0 0.0
      %475 = vmatpush1.msra.mxu0 0.0
      %476 = vmatprep.subr.mxu0 0.0
      %477 = vmatpush1.msra.mxu0 0.0
      %478 = vmatprep.subr.mxu0 0.0
      %479 = vmatpush1.msra.mxu0 0.0
      %480 = vmatprep.subr.mxu0 0.0
      %481 = vmatpush1.msra.mxu0 0.0
      %482 = vmatprep.subr.mxu0 0.0
      %483 = vmatpush1.msra.mxu0 0.0
      %484 = vmatprep.subr.mxu0 0.0
      %485 = vmatpush1.msra.mxu0 0.0
      %486 = vmatprep.subr.mxu0 0.0
      %487 = vmatpush1.msra.mxu0 0.0
      %488 = vmatprep.subr.mxu0 0.0
      %489 = vmatpush1.msra.mxu0 0.0
      %490 = vmatprep.subr.mxu0 0.0
      %491 = vmatpush1.msra.mxu0 0.0
      %492 = vmatprep.subr.mxu0 0.0
      %493 = vmatpush1.msra.mxu0 0.0
      %494 = vmatprep.subr.mxu0 0.0
      %495 = vmatpush1.msra.mxu0 0.0
      %496 = vmatprep.subr.mxu0 0.0
      %497 = vmatpush1.msra.mxu0 0.0
      %498 = vmatprep.subr.mxu0 0.0
      %499 = vmatpush1.msra.mxu0 0.0
      %500 = vmatprep.subr.mxu0 0.0
      %501 = vmatpush1.msra.mxu0 0.0
      %502 = vmatprep.mubr.f32.mxu0 0.0
      %503 = vmatmul.mubr.f32.gmra.mrb[0].mxu0 %v412
      %v504 = vpop.f32.mrb[0].mxu0
      %v505 = vadd.f32 %v436, %v504
      %v506 = vpop.f32.mrb[0].mxu0
      %507 = vmatprep.mubr.f32.mxu0 0.0
      %508 = vmatmul.mubr.f32.gmra.mrb[0].mxu0 %v413
      %v509 = vpop.f32.mrb[0].mxu0
      %v510 = vadd.f32 %v436, %v509
      %v511 = vpop.f32.mrb[0].mxu0
      %512 = vmatprep.mubr.f32.mxu0 0.0
      %513 = vmatmul.mubr.f32.gmra.mrb[0].mxu0 %v414
      %v514 = vpop.f32.mrb[0].mxu0
      %v515 = vadd.f32 %v436, %v514
      %v516 = vpop.f32.mrb[0].mxu0
      %517 = vdwg.mxu0
      %v518 = vmax.f32 %v505, 0.0
      %v519 = vmax.f32 %v510, 0.0
      %v520 = vmax.f32 %v515, 0.0
      %v521 = vsel %vm293, %v518, 0.0
      %v522 = vsel %vm294, %v519, 0.0
      %v523 = vsel %vm295, %v520, 0.0
      %vm527 = vcmask 1040384
      %v528 = vrot.slane %v521, 7
      %v529 = vrot.slane %v522, 7
      %v530 = vsel %vm527, %v528, %v529
      %v531 = vrot.slane %v523, 7
      %v532 = vsel %vm527, %v529, %v531
      %536 = vst [vmem:[#allocation2 + $0x10] sm:$0xfe] %v528
      %537 = vst [vmem:[#allocation2 + $0x30] sm:$0xff] %v530
      %538 = vst [vmem:[#allocation2 + $0x50] sm:$0x1f] %v532
      %s539 = scalar_lea.vmem %s219, 48
      %v540 = vld [vmem:[%s539] sm:$0xff]
      %v541 = vld [vmem:[%s539 + $0x8] sm:$0xff]
      %v542 = vld [vmem:[%s539 + $0x10] sm:$0xf]
      %v543 = vld [vmem:[%s1] sm:$0xff]
      %v544 = vld [vmem:[%s1 + $0x8] sm:$0xff]
      %v545 = vld [vmem:[%s1 + $0x10] sm:$0xff]
      %v546 = vld [vmem:[%s1 + $0x18] sm:$0xff]
      %v547 = vld [vmem:[%s1 + $0x20] sm:$0xff]
      %v548 = vld [vmem:[%s1 + $0x28] sm:$0xff]
      %v549 = vld [vmem:[%s1 + $0x30] sm:$0xff]
      %v550 = vld [vmem:[%s1 + $0x38] sm:$0xff]
      %v551 = vld [vmem:[%s1 + $0x40] sm:$0xff]
      %v552 = vld [vmem:[%s1 + $0x48] sm:$0xff]
      %v553 = vld [vmem:[%s1 + $0x50] sm:$0xff]
      %v554 = vld [vmem:[%s1 + $0x58] sm:$0xff]
      %v555 = vld [vmem:[%s1 + $0x60] sm:$0xff]
      %v556 = vld [vmem:[%s1 + $0x68] sm:$0xff]
      %v557 = vld [vmem:[%s1 + $0x70] sm:$0xff]
      %v558 = vld [vmem:[%s1 + $0x78] sm:$0xff]
      %v559 = vld [vmem:[%s2] sm:$0x1]
      %v561 = vlaneseq
      %v562 = vshrl.u32 %v561, 7
      %v563 = vsub.s32 0, %v562
      %v564 = vrot.slane %v559, %v563
      %566 = vmatprep.subr.mxu0 0.0
      %567 = vmatpush1.msra.mxu0 %v543
      %568 = vmatprep.subr.mxu0 0.0
      %569 = vmatpush1.msra.mxu0 %v544
      %570 = vmatprep.subr.mxu0 0.0
      %571 = vmatpush1.msra.mxu0 %v545
      %572 = vmatprep.subr.mxu0 0.0
      %573 = vmatpush1.msra.mxu0 %v546
      %574 = vmatprep.subr.mxu0 0.0
      %575 = vmatpush1.msra.mxu0 %v547
      %576 = vmatprep.subr.mxu0 0.0
      %577 = vmatpush1.msra.mxu0 %v548
      %578 = vmatprep.subr.mxu0 0.0
      %579 = vmatpush1.msra.mxu0 %v549
      %580 = vmatprep.subr.mxu0 0.0
      %581 = vmatpush1.msra.mxu0 %v550
      %582 = vmatprep.subr.mxu0 0.0
      %583 = vmatpush1.msra.mxu0 %v551
      %584 = vmatprep.subr.mxu0 0.0
      %585 = vmatpush1.msra.mxu0 %v552
      %586 = vmatprep.subr.mxu0 0.0
      %587 = vmatpush1.msra.mxu0 %v553
      %588 = vmatprep.subr.mxu0 0.0
      %589 = vmatpush1.msra.mxu0 %v554
      %590 = vmatprep.subr.mxu0 0.0
      %591 = vmatpush1.msra.mxu0 %v555
      %592 = vmatprep.subr.mxu0 0.0
      %593 = vmatpush1.msra.mxu0 %v556
      %594 = vmatprep.subr.mxu0 0.0
      %595 = vmatpush1.msra.mxu0 %v557
      %596 = vmatprep.subr.mxu0 0.0
      %597 = vmatpush1.msra.mxu0 %v558
      %598 = vmatprep.subr.mxu0 0.0
      %599 = vmatpush1.msra.mxu0 0.0
      %600 = vmatprep.subr.mxu0 0.0
      %601 = vmatpush1.msra.mxu0 0.0
      %602 = vmatprep.subr.mxu0 0.0
      %603 = vmatpush1.msra.mxu0 0.0
      %604 = vmatprep.subr.mxu0 0.0
      %605 = vmatpush1.msra.mxu0 0.0
      %606 = vmatprep.subr.mxu0 0.0
      %607 = vmatpush1.msra.mxu0 0.0
      %608 = vmatprep.subr.mxu0 0.0
      %609 = vmatpush1.msra.mxu0 0.0
      %610 = vmatprep.subr.mxu0 0.0
      %611 = vmatpush1.msra.mxu0 0.0
      %612 = vmatprep.subr.mxu0 0.0
      %613 = vmatpush1.msra.mxu0 0.0
      %614 = vmatprep.subr.mxu0 0.0
      %615 = vmatpush1.msra.mxu0 0.0
      %616 = vmatprep.subr.mxu0 0.0
      %617 = vmatpush1.msra.mxu0 0.0
      %618 = vmatprep.subr.mxu0 0.0
      %619 = vmatpush1.msra.mxu0 0.0
      %620 = vmatprep.subr.mxu0 0.0
      %621 = vmatpush1.msra.mxu0 0.0
      %622 = vmatprep.subr.mxu0 0.0
      %623 = vmatpush1.msra.mxu0 0.0
      %624 = vmatprep.subr.mxu0 0.0
      %625 = vmatpush1.msra.mxu0 0.0
      %626 = vmatprep.subr.mxu0 0.0
      %627 = vmatpush1.msra.mxu0 0.0
      %628 = vmatprep.subr.mxu0 0.0
      %629 = vmatpush1.msra.mxu0 0.0
      %630 = vmatprep.mubr.f32.mxu0 0.0
      %631 = vmatmul.mubr.f32.gmra.mrb[0].mxu0 %v540
      %v632 = vpop.f32.mrb[0].mxu0
      %v633 = vadd.f32 %v564, %v632
      %v634 = vpop.f32.mrb[0].mxu0
      %635 = vmatprep.mubr.f32.mxu0 0.0
      %636 = vmatmul.mubr.f32.gmra.mrb[0].mxu0 %v541
      %v637 = vpop.f32.mrb[0].mxu0
      %v638 = vadd.f32 %v564, %v637
      %v639 = vpop.f32.mrb[0].mxu0
      %640 = vmatprep.mubr.f32.mxu0 0.0
      %641 = vmatmul.mubr.f32.gmra.mrb[0].mxu0 %v542
      %v642 = vpop.f32.mrb[0].mxu0
      %v643 = vadd.f32 %v564, %v642
      %v644 = vpop.f32.mrb[0].mxu0
      %645 = vdwg.mxu0
      %v646 = vmax.f32 %v633, 0.0
      %v647 = vmax.f32 %v638, 0.0
      %v648 = vmax.f32 %v643, 0.0
      %v649 = vsel %vm293, %v646, 0.0
      %v650 = vsel %vm294, %v647, 0.0
      %v651 = vsel %vm295, %v648, 0.0
      %vm655 = vcmask 1044480
      %v656 = vrot.slane %v649, 3
      %v657 = vrot.slane %v650, 3
      %v658 = vsel %vm655, %v656, %v657
      %v659 = vrot.slane %v651, 3
      %v660 = vsel %vm655, %v657, %v659
      %665 = vst [vmem:[#allocation2 + $0x8] sm:$0xe0] %v656
      %666 = vst [vmem:[#allocation2 + $0x28] sm:$0xff] %v658
      %667 = vst [vmem:[#allocation2 + $0x48] sm:$0xff] %v660
      %668 = vst [vmem:[#allocation2 + $0x68] sm:$0x1] %v659
      %s669 = scalar_lea.vmem %s219, 72
      %v670 = vld [vmem:[%s669] sm:$0xff]
      %v671 = vld [vmem:[%s669 + $0x8] sm:$0xff]
      %v672 = vld [vmem:[%s669 + $0x10] sm:$0xf]
      %v673 = vld [vmem:[%s1] sm:$0xff]
      %v674 = vld [vmem:[%s1 + $0x8] sm:$0xff]
      %v675 = vld [vmem:[%s1 + $0x10] sm:$0xff]
      %v676 = vld [vmem:[%s1 + $0x18] sm:$0xff]
      %v677 = vld [vmem:[%s1 + $0x20] sm:$0xff]
      %v678 = vld [vmem:[%s1 + $0x28] sm:$0xff]
      %v679 = vld [vmem:[%s1 + $0x30] sm:$0xff]
      %v680 = vld [vmem:[%s1 + $0x38] sm:$0xff]
      %v681 = vld [vmem:[%s1 + $0x40] sm:$0xff]
      %v682 = vld [vmem:[%s1 + $0x48] sm:$0xff]
      %v683 = vld [vmem:[%s1 + $0x50] sm:$0xff]
      %v684 = vld [vmem:[%s1 + $0x58] sm:$0xff]
      %v685 = vld [vmem:[%s1 + $0x60] sm:$0xff]
      %v686 = vld [vmem:[%s1 + $0x68] sm:$0xff]
      %v687 = vld [vmem:[%s1 + $0x70] sm:$0xff]
      %v688 = vld [vmem:[%s1 + $0x78] sm:$0xff]
      %v689 = vld [vmem:[%s2] sm:$0x1]
      %v691 = vlaneseq
      %v692 = vshrl.u32 %v691, 7
      %v693 = vsub.s32 0, %v692
      %v694 = vrot.slane %v689, %v693
      %696 = vmatprep.subr.mxu0 0.0
      %697 = vmatpush1.msra.mxu0 %v673
      %698 = vmatprep.subr.mxu0 0.0
      %699 = vmatpush1.msra.mxu0 %v674
      %700 = vmatprep.subr.mxu0 0.0
      %701 = vmatpush1.msra.mxu0 %v675
      %702 = vmatprep.subr.mxu0 0.0
      %703 = vmatpush1.msra.mxu0 %v676
      %704 = vmatprep.subr.mxu0 0.0
      %705 = vmatpush1.msra.mxu0 %v677
      %706 = vmatprep.subr.mxu0 0.0
      %707 = vmatpush1.msra.mxu0 %v678
      %708 = vmatprep.subr.mxu0 0.0
      %709 = vmatpush1.msra.mxu0 %v679
      %710 = vmatprep.subr.mxu0 0.0
      %711 = vmatpush1.msra.mxu0 %v680
      %712 = vmatprep.subr.mxu0 0.0
      %713 = vmatpush1.msra.mxu0 %v681
      %714 = vmatprep.subr.mxu0 0.0
      %715 = vmatpush1.msra.mxu0 %v682
      %716 = vmatprep.subr.mxu0 0.0
      %717 = vmatpush1.msra.mxu0 %v683
      %718 = vmatprep.subr.mxu0 0.0
      %719 = vmatpush1.msra.mxu0 %v684
      %720 = vmatprep.subr.mxu0 0.0
      %721 = vmatpush1.msra.mxu0 %v685
      %722 = vmatprep.subr.mxu0 0.0
      %723 = vmatpush1.msra.mxu0 %v686
      %724 = vmatprep.subr.mxu0 0.0
      %725 = vmatpush1.msra.mxu0 %v687
      %726 = vmatprep.subr.mxu0 0.0
      %727 = vmatpush1.msra.mxu0 %v688
      %728 = vmatprep.subr.mxu0 0.0
      %729 = vmatpush1.msra.mxu0 0.0
      %730 = vmatprep.subr.mxu0 0.0
      %731 = vmatpush1.msra.mxu0 0.0
      %732 = vmatprep.subr.mxu0 0.0
      %733 = vmatpush1.msra.mxu0 0.0
      %734 = vmatprep.subr.mxu0 0.0
      %735 = vmatpush1.msra.mxu0 0.0
      %736 = vmatprep.subr.mxu0 0.0
      %737 = vmatpush1.msra.mxu0 0.0
      %738 = vmatprep.subr.mxu0 0.0
      %739 = vmatpush1.msra.mxu0 0.0
      %740 = vmatprep.subr.mxu0 0.0
      %741 = vmatpush1.msra.mxu0 0.0
      %742 = vmatprep.subr.mxu0 0.0
      %743 = vmatpush1.msra.mxu0 0.0
      %744 = vmatprep.subr.mxu0 0.0
      %745 = vmatpush1.msra.mxu0 0.0
      %746 = vmatprep.subr.mxu0 0.0
      %747 = vmatpush1.msra.mxu0 0.0
      %748 = vmatprep.subr.mxu0 0.0
      %749 = vmatpush1.msra.mxu0 0.0
      %750 = vmatprep.subr.mxu0 0.0
      %751 = vmatpush1.msra.mxu0 0.0
      %752 = vmatprep.subr.mxu0 0.0
      %753 = vmatpush1.msra.mxu0 0.0
      %754 = vmatprep.subr.mxu0 0.0
      %755 = vmatpush1.msra.mxu0 0.0
      %756 = vmatprep.subr.mxu0 0.0
      %757 = vmatpush1.msra.mxu0 0.0
      %758 = vmatprep.subr.mxu0 0.0
      %759 = vmatpush1.msra.mxu0 0.0
      %760 = vmatprep.mubr.f32.mxu0 0.0
      %761 = vmatmul.mubr.f32.gmra.mrb[0].mxu0 %v670
      %v762 = vpop.f32.mrb[0].mxu0
      %v763 = vadd.f32 %v694, %v762
      %v764 = vpop.f32.mrb[0].mxu0
      %765 = vmatprep.mubr.f32.mxu0 0.0
      %766 = vmatmul.mubr.f32.gmra.mrb[0].mxu0 %v671
      %v767 = vpop.f32.mrb[0].mxu0
      %v768 = vadd.f32 %v694, %v767
      %v769 = vpop.f32.mrb[0].mxu0
      %770 = vmatprep.mubr.f32.mxu0 0.0
      %771 = vmatmul.mubr.f32.gmra.mrb[0].mxu0 %v672
      %v772 = vpop.f32.mrb[0].mxu0
      %v773 = vadd.f32 %v694, %v772
      %v774 = vpop.f32.mrb[0].mxu0
      %775 = vdwg.mxu0
      %v776 = vmax.f32 %v763, 0.0
      %v777 = vmax.f32 %v768, 0.0
      %v778 = vmax.f32 %v773, 0.0
      %v779 = vsel %vm293, %v776, 0.0
      %v780 = vsel %vm294, %v777, 0.0
      %v781 = vsel %vm295, %v778, 0.0
      %vm785 = vcmask 1045504
      %v786 = vrot.slane %v779, 2
      %v787 = vrot.slane %v780, 2
      %v788 = vsel %vm785, %v786, %v787
      %v789 = vrot.slane %v781, 2
      %v790 = vsel %vm785, %v787, %v789
      %795 = vst [vmem:[#allocation2] sm:$0xc0] %v786
      %796 = vst [vmem:[#allocation2 + $0x20] sm:$0xff] %v788
      %797 = vst [vmem:[#allocation2 + $0x40] sm:$0xff] %v790
      %798 = vst [vmem:[#allocation2 + $0x60] sm:$0x3] %v789
      %v799 = vld [vmem:[#allocation2] sm:$0xff]
      %v800 = vld [vmem:[#allocation2 + $0x20] sm:$0xff]
      %v801 = vld [vmem:[#allocation2 + $0x40] sm:$0xf]
      %v802 = vld [vmem:[%s3] sm:$0xff]
      %v803 = vld [vmem:[%s3 + $0x8] sm:$0xff]
      %v804 = vld [vmem:[%s3 + $0x10] sm:$0xff]
      %v805 = vld [vmem:[%s3 + $0x18] sm:$0xff]
      %v806 = vld [vmem:[%s3 + $0x20] sm:$0xff]
      %v807 = vld [vmem:[%s3 + $0x28] sm:$0xff]
      %v808 = vld [vmem:[%s3 + $0x30] sm:$0xff]
      %v809 = vld [vmem:[%s3 + $0x38] sm:$0xff]
      %v810 = vld [vmem:[%s3 + $0x40] sm:$0xff]
      %v811 = vld [vmem:[%s3 + $0x48] sm:$0xff]
      %v812 = vld [vmem:[%s3 + $0x50] sm:$0xff]
      %v813 = vld [vmem:[%s3 + $0x58] sm:$0xff]
      %v814 = vld [vmem:[%s3 + $0x60] sm:$0xff]
      %v815 = vld [vmem:[%s3 + $0x68] sm:$0xff]
      %v816 = vld [vmem:[%s3 + $0x70] sm:$0xff]
      %v817 = vld [vmem:[%s3 + $0x78] sm:$0xff]
      %v818 = vld [vmem:[#allocation2 + $0x8] sm:$0xff]
      %v819 = vld [vmem:[#allocation2 + $0x28] sm:$0xff]
      %v820 = vld [vmem:[#allocation2 + $0x48] sm:$0xf]
      %s821 = scalar_lea.vmem %s3, 128
      %v822 = vld [vmem:[%s821] sm:$0xff]
      %v823 = vld [vmem:[%s821 + $0x8] sm:$0xff]
      %v824 = vld [vmem:[%s821 + $0x10] sm:$0xff]
      %v825 = vld [vmem:[%s821 + $0x18] sm:$0xff]
      %v826 = vld [vmem:[%s821 + $0x20] sm:$0xff]
      %v827 = vld [vmem:[%s821 + $0x28] sm:$0xff]
      %v828 = vld [vmem:[%s821 + $0x30] sm:$0xff]
      %v829 = vld [vmem:[%s821 + $0x38] sm:$0xff]
      %v830 = vld [vmem:[%s821 + $0x40] sm:$0xff]
      %v831 = vld [vmem:[%s821 + $0x48] sm:$0xff]
      %v832 = vld [vmem:[%s821 + $0x50] sm:$0xff]
      %v833 = vld [vmem:[%s821 + $0x58] sm:$0xff]
      %v834 = vld [vmem:[%s821 + $0x60] sm:$0xff]
      %v835 = vld [vmem:[%s821 + $0x68] sm:$0xff]
      %v836 = vld [vmem:[%s821 + $0x70] sm:$0xff]
      %v837 = vld [vmem:[%s821 + $0x78] sm:$0xff]
      %838 = vmatprep.subr.mxu0 0.0
      %839 = vmatpush1.msra.mxu0 %v822
      %840 = vmatprep.subr.mxu0 0.0
      %841 = vmatpush1.msra.mxu0 %v823
      %842 = vmatprep.subr.mxu0 0.0
      %843 = vmatpush1.msra.mxu0 %v824
      %844 = vmatprep.subr.mxu0 0.0
      %845 = vmatpush1.msra.mxu0 %v825
      %846 = vmatprep.subr.mxu0 0.0
      %847 = vmatpush1.msra.mxu0 %v826
      %848 = vmatprep.subr.mxu0 0.0
      %849 = vmatpush1.msra.mxu0 %v827
      %850 = vmatprep.subr.mxu0 0.0
      %851 = vmatpush1.msra.mxu0 %v828
      %852 = vmatprep.subr.mxu0 0.0
      %853 = vmatpush1.msra.mxu0 %v829
      %854 = vmatprep.subr.mxu0 0.0
      %855 = vmatpush1.msra.mxu0 %v830
      %856 = vmatprep.subr.mxu0 0.0
      %857 = vmatpush1.msra.mxu0 %v831
      %858 = vmatprep.subr.mxu0 0.0
      %859 = vmatpush1.msra.mxu0 %v832
      %860 = vmatprep.subr.mxu0 0.0
      %861 = vmatpush1.msra.mxu0 %v833
      %862 = vmatprep.subr.mxu0 0.0
      %863 = vmatpush1.msra.mxu0 %v834
      %864 = vmatprep.subr.mxu0 0.0
      %865 = vmatpush1.msra.mxu0 %v835
      %866 = vmatprep.subr.mxu0 0.0
      %867 = vmatpush1.msra.mxu0 %v836
      %868 = vmatprep.subr.mxu0 0.0
      %869 = vmatpush1.msra.mxu0 %v837
      %870 = vmatprep.subr.mxu0 0.0
      %871 = vmatpush1.msra.mxu0 0.0
      %872 = vmatprep.subr.mxu0 0.0
      %873 = vmatpush1.msra.mxu0 0.0
      %874 = vmatprep.subr.mxu0 0.0
      %875 = vmatpush1.msra.mxu0 0.0
      %876 = vmatprep.subr.mxu0 0.0
      %877 = vmatpush1.msra.mxu0 0.0
      %878 = vmatprep.subr.mxu0 0.0
      %879 = vmatpush1.msra.mxu0 0.0
      %880 = vmatprep.subr.mxu0 0.0
      %881 = vmatpush1.msra.mxu0 0.0
      %882 = vmatprep.subr.mxu0 0.0
      %883 = vmatpush1.msra.mxu0 0.0
      %884 = vmatprep.subr.mxu0 0.0
      %885 = vmatpush1.msra.mxu0 0.0
      %886 = vmatprep.subr.mxu0 0.0
      %887 = vmatpush1.msra.mxu0 0.0
      %888 = vmatprep.subr.mxu0 0.0
      %889 = vmatpush1.msra.mxu0 0.0
      %890 = vmatprep.subr.mxu0 0.0
      %891 = vmatpush1.msra.mxu0 0.0
      %892 = vmatprep.subr.mxu0 0.0
      %893 = vmatpush1.msra.mxu0 0.0
      %894 = vmatprep.subr.mxu0 0.0
      %895 = vmatpush1.msra.mxu0 0.0
      %896 = vmatprep.subr.mxu0 0.0
      %897 = vmatpush1.msra.mxu0 0.0
      %898 = vmatprep.subr.mxu0 0.0
      %899 = vmatpush1.msra.mxu0 0.0
      %900 = vmatprep.subr.mxu0 0.0
      %901 = vmatpush1.msra.mxu0 0.0
      %902 = vmatprep.mubr.f32.mxu0 0.0
      %903 = vmatmul.mubr.f32.gmra.mrb[0].mxu0 %v818
      %v904 = vpop.f32.mrb[0].mxu0
      %v905 = vadd.f32 0.0, %v904
      %v906 = vpop.f32.mrb[0].mxu0
      %907 = vmatprep.mubr.f32.mxu0 0.0
      %908 = vmatmul.mubr.f32.gmra.mrb[0].mxu0 %v819
      %v909 = vpop.f32.mrb[0].mxu0
      %v910 = vadd.f32 0.0, %v909
      %v911 = vpop.f32.mrb[0].mxu0
      %912 = vmatprep.mubr.f32.mxu0 0.0
      %913 = vmatmul.mubr.f32.gmra.mrb[0].mxu0 %v820
      %v914 = vpop.f32.mrb[0].mxu0
      %v915 = vadd.f32 0.0, %v914
      %v916 = vpop.f32.mrb[0].mxu0
      %917 = vdwg.mxu0
      %918 = vmatprep.subr.mxu0 0.0
      %919 = vmatpush1.msra.mxu0 %v802
      %920 = vmatprep.subr.mxu0 0.0
      %921 = vmatpush1.msra.mxu0 %v803
      %922 = vmatprep.subr.mxu0 0.0
      %923 = vmatpush1.msra.mxu0 %v804
      %924 = vmatprep.subr.mxu0 0.0
      %925 = vmatpush1.msra.mxu0 %v805
      %926 = vmatprep.subr.mxu0 0.0
      %927 = vmatpush1.msra.mxu0 %v806
      %928 = vmatprep.subr.mxu0 0.0
      %929 = vmatpush1.msra.mxu0 %v807
      %930 = vmatprep.subr.mxu0 0.0
      %931 = vmatpush1.msra.mxu0 %v808
      %932 = vmatprep.subr.mxu0 0.0
      %933 = vmatpush1.msra.mxu0 %v809
      %934 = vmatprep.subr.mxu0 0.0
      %935 = vmatpush1.msra.mxu0 %v810
      %936 = vmatprep.subr.mxu0 0.0
      %937 = vmatpush1.msra.mxu0 %v811
      %938 = vmatprep.subr.mxu0 0.0
      %939 = vmatpush1.msra.mxu0 %v812
      %940 = vmatprep.subr.mxu0 0.0
      %941 = vmatpush1.msra.mxu0 %v813
      %942 = vmatprep.subr.mxu0 0.0
      %943 = vmatpush1.msra.mxu0 %v814
      %944 = vmatprep.subr.mxu0 0.0
      %945 = vmatpush1.msra.mxu0 %v815
      %946 = vmatprep.subr.mxu0 0.0
      %947 = vmatpush1.msra.mxu0 %v816
      %948 = vmatprep.subr.mxu0 0.0
      %949 = vmatpush1.msra.mxu0 %v817
      %950 = vmatprep.subr.mxu0 0.0
      %951 = vmatpush1.msra.mxu0 0.0
      %952 = vmatprep.subr.mxu0 0.0
      %953 = vmatpush1.msra.mxu0 0.0
      %954 = vmatprep.subr.mxu0 0.0
      %955 = vmatpush1.msra.mxu0 0.0
      %956 = vmatprep.subr.mxu0 0.0
      %957 = vmatpush1.msra.mxu0 0.0
      %958 = vmatprep.subr.mxu0 0.0
      %959 = vmatpush1.msra.mxu0 0.0
      %960 = vmatprep.subr.mxu0 0.0
      %961 = vmatpush1.msra.mxu0 0.0
      %962 = vmatprep.subr.mxu0 0.0
      %963 = vmatpush1.msra.mxu0 0.0
      %964 = vmatprep.subr.mxu0 0.0
      %965 = vmatpush1.msra.mxu0 0.0
      %966 = vmatprep.subr.mxu0 0.0
      %967 = vmatpush1.msra.mxu0 0.0
      %968 = vmatprep.subr.mxu0 0.0
      %969 = vmatpush1.msra.mxu0 0.0
      %970 = vmatprep.subr.mxu0 0.0
      %971 = vmatpush1.msra.mxu0 0.0
      %972 = vmatprep.subr.mxu0 0.0
      %973 = vmatpush1.msra.mxu0 0.0
      %974 = vmatprep.subr.mxu0 0.0
      %975 = vmatpush1.msra.mxu0 0.0
      %976 = vmatprep.subr.mxu0 0.0
      %977 = vmatpush1.msra.mxu0 0.0
      %978 = vmatprep.subr.mxu0 0.0
      %979 = vmatpush1.msra.mxu0 0.0
      %980 = vmatprep.subr.mxu0 0.0
      %981 = vmatpush1.msra.mxu0 0.0
      %982 = vmatprep.mubr.f32.mxu0 0.0
      %983 = vmatmul.mubr.f32.gmra.mrb[0].mxu0 %v799
      %v984 = vpop.f32.mrb[0].mxu0
      %v985 = vadd.f32 %v905, %v984
      %v986 = vpop.f32.mrb[0].mxu0
      %987 = vmatprep.mubr.f32.mxu0 0.0
      %988 = vmatmul.mubr.f32.gmra.mrb[0].mxu0 %v800
      %v989 = vpop.f32.mrb[0].mxu0
      %v990 = vadd.f32 %v910, %v989
      %v991 = vpop.f32.mrb[0].mxu0
      %992 = vmatprep.mubr.f32.mxu0 0.0
      %993 = vmatmul.mubr.f32.gmra.mrb[0].mxu0 %v801
      %v994 = vpop.f32.mrb[0].mxu0
      %v995 = vadd.f32 %v915, %v994
      %v996 = vpop.f32.mrb[0].mxu0
      %997 = vdwg.mxu0
      %v998 = vld [vmem:[#allocation2] sm:$0xfe]
      %v999 = vld [vmem:[#allocation2 + $0x40] sm:$0x1f]
      %s1000 = scalar_lea.vmem %s3, 256
      %v1001 = vld [vmem:[%s1000] sm:$0xff]
      %v1002 = vld [vmem:[%s1000 + $0x8] sm:$0xff]
      %v1003 = vld [vmem:[%s1000 + $0x10] sm:$0xff]
      %v1004 = vld [vmem:[%s1000 + $0x18] sm:$0xff]
      %v1005 = vld [vmem:[%s1000 + $0x20] sm:$0xff]
      %v1006 = vld [vmem:[%s1000 + $0x28] sm:$0xff]
      %v1007 = vld [vmem:[%s1000 + $0x30] sm:$0xff]
      %v1008 = vld [vmem:[%s1000 + $0x38] sm:$0xff]
      %v1009 = vld [vmem:[%s1000 + $0x40] sm:$0xff]
      %v1010 = vld [vmem:[%s1000 + $0x48] sm:$0xff]
      %v1011 = vld [vmem:[%s1000 + $0x50] sm:$0xff]
      %v1012 = vld [vmem:[%s1000 + $0x58] sm:$0xff]
      %v1013 = vld [vmem:[%s1000 + $0x60] sm:$0xff]
      %v1014 = vld [vmem:[%s1000 + $0x68] sm:$0xff]
      %v1015 = vld [vmem:[%s1000 + $0x70] sm:$0xff]
      %v1016 = vld [vmem:[%s1000 + $0x78] sm:$0xff]
      %vm1020 = vcmask 1046528
      %v1021 = vrot.slane %v998, 1
      %v1022 = vrot.slane %v800, 1
      %v1023 = vsel %vm1020, %v1021, %v1022
      %v1024 = vrot.slane %v999, 1
      %v1025 = vsel %vm1020, %v1022, %v1024
      %1029 = vmatprep.subr.mxu0 0.0
      %1030 = vmatpush1.msra.mxu0 %v1001
      %1031 = vmatprep.subr.mxu0 0.0
      %1032 = vmatpush1.msra.mxu0 %v1002
      %1033 = vmatprep.subr.mxu0 0.0
      %1034 = vmatpush1.msra.mxu0 %v1003
      %1035 = vmatprep.subr.mxu0 0.0
      %1036 = vmatpush1.msra.mxu0 %v1004
      %1037 = vmatprep.subr.mxu0 0.0
      %1038 = vmatpush1.msra.mxu0 %v1005
      %1039 = vmatprep.subr.mxu0 0.0
      %1040 = vmatpush1.msra.mxu0 %v1006
      %1041 = vmatprep.subr.mxu0 0.0
      %1042 = vmatpush1.msra.mxu0 %v1007
      %1043 = vmatprep.subr.mxu0 0.0
      %1044 = vmatpush1.msra.mxu0 %v1008
      %1045 = vmatprep.subr.mxu0 0.0
      %1046 = vmatpush1.msra.mxu0 %v1009
      %1047 = vmatprep.subr.mxu0 0.0
      %1048 = vmatpush1.msra.mxu0 %v1010
      %1049 = vmatprep.subr.mxu0 0.0
      %1050 = vmatpush1.msra.mxu0 %v1011
      %1051 = vmatprep.subr.mxu0 0.0
      %1052 = vmatpush1.msra.mxu0 %v1012
      %1053 = vmatprep.subr.mxu0 0.0
      %1054 = vmatpush1.msra.mxu0 %v1013
      %1055 = vmatprep.subr.mxu0 0.0
      %1056 = vmatpush1.msra.mxu0 %v1014
      %1057 = vmatprep.subr.mxu0 0.0
      %1058 = vmatpush1.msra.mxu0 %v1015
      %1059 = vmatprep.subr.mxu0 0.0
      %1060 = vmatpush1.msra.mxu0 %v1016
      %1061 = vmatprep.subr.mxu0 0.0
      %1062 = vmatpush1.msra.mxu0 0.0
      %1063 = vmatprep.subr.mxu0 0.0
      %1064 = vmatpush1.msra.mxu0 0.0
      %1065 = vmatprep.subr.mxu0 0.0
      %1066 = vmatpush1.msra.mxu0 0.0
      %1067 = vmatprep.subr.mxu0 0.0
      %1068 = vmatpush1.msra.mxu0 0.0
      %1069 = vmatprep.subr.mxu0 0.0
      %1070 = vmatpush1.msra.mxu0 0.0
      %1071 = vmatprep.subr.mxu0 0.0
      %1072 = vmatpush1.msra.mxu0 0.0
      %1073 = vmatprep.subr.mxu0 0.0
      %1074 = vmatpush1.msra.mxu0 0.0
      %1075 = vmatprep.subr.mxu0 0.0
      %1076 = vmatpush1.msra.mxu0 0.0
      %1077 = vmatprep.subr.mxu0 0.0
      %1078 = vmatpush1.msra.mxu0 0.0
      %1079 = vmatprep.subr.mxu0 0.0
      %1080 = vmatpush1.msra.mxu0 0.0
      %1081 = vmatprep.subr.mxu0 0.0
      %1082 = vmatpush1.msra.mxu0 0.0
      %1083 = vmatprep.subr.mxu0 0.0
      %1084 = vmatpush1.msra.mxu0 0.0
      %1085 = vmatprep.subr.mxu0 0.0
      %1086 = vmatpush1.msra.mxu0 0.0
      %1087 = vmatprep.subr.mxu0 0.0
      %1088 = vmatpush1.msra.mxu0 0.0
      %1089 = vmatprep.subr.mxu0 0.0
      %1090 = vmatpush1.msra.mxu0 0.0
      %1091 = vmatprep.subr.mxu0 0.0
      %1092 = vmatpush1.msra.mxu0 0.0
      %1093 = vmatprep.mubr.f32.mxu0 0.0
      %1094 = vmatmul.mubr.f32.gmra.mrb[0].mxu0 %v1023
      %v1095 = vpop.f32.mrb[0].mxu0
      %v1096 = vadd.f32 0.0, %v1095
      %v1097 = vpop.f32.mrb[0].mxu0
      %1098 = vmatprep.mubr.f32.mxu0 0.0
      %1099 = vmatmul.mubr.f32.gmra.mrb[0].mxu0 %v1025
      %v1100 = vpop.f32.mrb[0].mxu0
      %v1101 = vadd.f32 0.0, %v1100
      %v1102 = vpop.f32.mrb[0].mxu0
      %1103 = vmatprep.mubr.f32.mxu0 0.0
      %1104 = vmatmul.mubr.f32.gmra.mrb[0].mxu0 %v1024
      %v1105 = vpop.f32.mrb[0].mxu0
      %v1106 = vadd.f32 0.0, %v1105
      %v1107 = vpop.f32.mrb[0].mxu0
      %1108 = vdwg.mxu0
      %v1109 = vadd.f32 %v985, %v1096
      %v1110 = vadd.f32 %v990, %v1101
      %v1111 = vadd.f32 %v995, %v1106
      %v1112 = vld [vmem:[#allocation2 + $0x10] sm:$0xff]
      %v1113 = vld [vmem:[#allocation2 + $0x30] sm:$0xff]
      %v1114 = vld [vmem:[#allocation2 + $0x50] sm:$0xf]
      %s1115 = scalar_lea.vmem %s3, 384
      %v1116 = vld [vmem:[%s1115] sm:$0xff]
      %v1117 = vld [vmem:[%s1115 + $0x8] sm:$0xff]
      %v1118 = vld [vmem:[%s1115 + $0x10] sm:$0xff]
      %v1119 = vld [vmem:[%s1115 + $0x18] sm:$0xff]
      %v1120 = vld [vmem:[%s1115 + $0x20] sm:$0xff]
      %v1121 = vld [vmem:[%s1115 + $0x28] sm:$0xff]
      %v1122 = vld [vmem:[%s1115 + $0x30] sm:$0xff]
      %v1123 = vld [vmem:[%s1115 + $0x38] sm:$0xff]
      %v1124 = vld [vmem:[%s1115 + $0x40] sm:$0xff]
      %v1125 = vld [vmem:[%s1115 + $0x48] sm:$0xff]
      %v1126 = vld [vmem:[%s1115 + $0x50] sm:$0xff]
      %v1127 = vld [vmem:[%s1115 + $0x58] sm:$0xff]
      %v1128 = vld [vmem:[%s1115 + $0x60] sm:$0xff]
      %v1129 = vld [vmem:[%s1115 + $0x68] sm:$0xff]
      %v1130 = vld [vmem:[%s1115 + $0x70] sm:$0xff]
      %v1131 = vld [vmem:[%s1115 + $0x78] sm:$0xff]
      %1132 = vmatprep.subr.mxu0 0.0
      %1133 = vmatpush1.msra.mxu0 %v1116
      %1134 = vmatprep.subr.mxu0 0.0
      %1135 = vmatpush1.msra.mxu0 %v1117
      %1136 = vmatprep.subr.mxu0 0.0
      %1137 = vmatpush1.msra.mxu0 %v1118
      %1138 = vmatprep.subr.mxu0 0.0
      %1139 = vmatpush1.msra.mxu0 %v1119
      %1140 = vmatprep.subr.mxu0 0.0
      %1141 = vmatpush1.msra.mxu0 %v1120
      %1142 = vmatprep.subr.mxu0 0.0
      %1143 = vmatpush1.msra.mxu0 %v1121
      %1144 = vmatprep.subr.mxu0 0.0
      %1145 = vmatpush1.msra.mxu0 %v1122
      %1146 = vmatprep.subr.mxu0 0.0
      %1147 = vmatpush1.msra.mxu0 %v1123
      %1148 = vmatprep.subr.mxu0 0.0
      %1149 = vmatpush1.msra.mxu0 %v1124
      %1150 = vmatprep.subr.mxu0 0.0
      %1151 = vmatpush1.msra.mxu0 %v1125
      %1152 = vmatprep.subr.mxu0 0.0
      %1153 = vmatpush1.msra.mxu0 %v1126
      %1154 = vmatprep.subr.mxu0 0.0
      %1155 = vmatpush1.msra.mxu0 %v1127
      %1156 = vmatprep.subr.mxu0 0.0
      %1157 = vmatpush1.msra.mxu0 %v1128
      %1158 = vmatprep.subr.mxu0 0.0
      %1159 = vmatpush1.msra.mxu0 %v1129
      %1160 = vmatprep.subr.mxu0 0.0
      %1161 = vmatpush1.msra.mxu0 %v1130
      %1162 = vmatprep.subr.mxu0 0.0
      %1163 = vmatpush1.msra.mxu0 %v1131
      %1164 = vmatprep.subr.mxu0 0.0
      %1165 = vmatpush1.msra.mxu0 0.0
      %1166 = vmatprep.subr.mxu0 0.0
      %1167 = vmatpush1.msra.mxu0 0.0
      %1168 = vmatprep.subr.mxu0 0.0
      %1169 = vmatpush1.msra.mxu0 0.0
      %1170 = vmatprep.subr.mxu0 0.0
      %1171 = vmatpush1.msra.mxu0 0.0
      %1172 = vmatprep.subr.mxu0 0.0
      %1173 = vmatpush1.msra.mxu0 0.0
      %1174 = vmatprep.subr.mxu0 0.0
      %1175 = vmatpush1.msra.mxu0 0.0
      %1176 = vmatprep.subr.mxu0 0.0
      %1177 = vmatpush1.msra.mxu0 0.0
      %1178 = vmatprep.subr.mxu0 0.0
      %1179 = vmatpush1.msra.mxu0 0.0
      %1180 = vmatprep.subr.mxu0 0.0
      %1181 = vmatpush1.msra.mxu0 0.0
      %1182 = vmatprep.subr.mxu0 0.0
      %1183 = vmatpush1.msra.mxu0 0.0
      %1184 = vmatprep.subr.mxu0 0.0
      %1185 = vmatpush1.msra.mxu0 0.0
      %1186 = vmatprep.subr.mxu0 0.0
      %1187 = vmatpush1.msra.mxu0 0.0
      %1188 = vmatprep.subr.mxu0 0.0
      %1189 = vmatpush1.msra.mxu0 0.0
      %1190 = vmatprep.subr.mxu0 0.0
      %1191 = vmatpush1.msra.mxu0 0.0
      %1192 = vmatprep.subr.mxu0 0.0
      %1193 = vmatpush1.msra.mxu0 0.0
      %1194 = vmatprep.subr.mxu0 0.0
      %1195 = vmatpush1.msra.mxu0 0.0
      %1196 = vmatprep.mubr.f32.mxu0 0.0
      %1197 = vmatmul.mubr.f32.gmra.mrb[0].mxu0 %v1112
      %v1198 = vpop.f32.mrb[0].mxu0
      %v1199 = vadd.f32 0.0, %v1198
      %v1200 = vpop.f32.mrb[0].mxu0
      %1201 = vmatprep.mubr.f32.mxu0 0.0
      %1202 = vmatmul.mubr.f32.gmra.mrb[0].mxu0 %v1113
      %v1203 = vpop.f32.mrb[0].mxu0
      %v1204 = vadd.f32 0.0, %v1203
      %v1205 = vpop.f32.mrb[0].mxu0
      %1206 = vmatprep.mubr.f32.mxu0 0.0
      %1207 = vmatmul.mubr.f32.gmra.mrb[0].mxu0 %v1114
      %v1208 = vpop.f32.mrb[0].mxu0
      %v1209 = vadd.f32 0.0, %v1208
      %v1210 = vpop.f32.mrb[0].mxu0
      %1211 = vdwg.mxu0
      %v1212 = vadd.f32 %v1109, %v1199
      %v1213 = vadd.f32 %v1110, %v1204
      %v1214 = vadd.f32 %v1111, %v1209
      %v1215 = vld [vmem:[#allocation2 + $0x18] sm:$0xff]
      %v1216 = vld [vmem:[#allocation2 + $0x38] sm:$0xff]
      %v1217 = vld [vmem:[#allocation2 + $0x58] sm:$0xf]
      %s1218 = scalar_lea.vmem %s3, 512
      %v1219 = vld [vmem:[%s1218] sm:$0xff]
      %v1220 = vld [vmem:[%s1218 + $0x8] sm:$0xff]
      %v1221 = vld [vmem:[%s1218 + $0x10] sm:$0xff]
      %v1222 = vld [vmem:[%s1218 + $0x18] sm:$0xff]
      %v1223 = vld [vmem:[%s1218 + $0x20] sm:$0xff]
      %v1224 = vld [vmem:[%s1218 + $0x28] sm:$0xff]
      %v1225 = vld [vmem:[%s1218 + $0x30] sm:$0xff]
      %v1226 = vld [vmem:[%s1218 + $0x38] sm:$0xff]
      %v1227 = vld [vmem:[%s1218 + $0x40] sm:$0xff]
      %v1228 = vld [vmem:[%s1218 + $0x48] sm:$0xff]
      %v1229 = vld [vmem:[%s1218 + $0x50] sm:$0xff]
      %v1230 = vld [vmem:[%s1218 + $0x58] sm:$0xff]
      %v1231 = vld [vmem:[%s1218 + $0x60] sm:$0xff]
      %v1232 = vld [vmem:[%s1218 + $0x68] sm:$0xff]
      %v1233 = vld [vmem:[%s1218 + $0x70] sm:$0xff]
      %v1234 = vld [vmem:[%s1218 + $0x78] sm:$0xff]
      %1235 = vmatprep.subr.mxu0 0.0
      %1236 = vmatpush1.msra.mxu0 %v1219
      %1237 = vmatprep.subr.mxu0 0.0
      %1238 = vmatpush1.msra.mxu0 %v1220
      %1239 = vmatprep.subr.mxu0 0.0
      %1240 = vmatpush1.msra.mxu0 %v1221
      %1241 = vmatprep.subr.mxu0 0.0
      %1242 = vmatpush1.msra.mxu0 %v1222
      %1243 = vmatprep.subr.mxu0 0.0
      %1244 = vmatpush1.msra.mxu0 %v1223
      %1245 = vmatprep.subr.mxu0 0.0
      %1246 = vmatpush1.msra.mxu0 %v1224
      %1247 = vmatprep.subr.mxu0 0.0
      %1248 = vmatpush1.msra.mxu0 %v1225
      %1249 = vmatprep.subr.mxu0 0.0
      %1250 = vmatpush1.msra.mxu0 %v1226
      %1251 = vmatprep.subr.mxu0 0.0
      %1252 = vmatpush1.msra.mxu0 %v1227
      %1253 = vmatprep.subr.mxu0 0.0
      %1254 = vmatpush1.msra.mxu0 %v1228
      %1255 = vmatprep.subr.mxu0 0.0
      %1256 = vmatpush1.msra.mxu0 %v1229
      %1257 = vmatprep.subr.mxu0 0.0
      %1258 = vmatpush1.msra.mxu0 %v1230
      %1259 = vmatprep.subr.mxu0 0.0
      %1260 = vmatpush1.msra.mxu0 %v1231
      %1261 = vmatprep.subr.mxu0 0.0
      %1262 = vmatpush1.msra.mxu0 %v1232
      %1263 = vmatprep.subr.mxu0 0.0
      %1264 = vmatpush1.msra.mxu0 %v1233
      %1265 = vmatprep.subr.mxu0 0.0
      %1266 = vmatpush1.msra.mxu0 %v1234
      %1267 = vmatprep.subr.mxu0 0.0
      %1268 = vmatpush1.msra.mxu0 0.0
      %1269 = vmatprep.subr.mxu0 0.0
      %1270 = vmatpush1.msra.mxu0 0.0
      %1271 = vmatprep.subr.mxu0 0.0
      %1272 = vmatpush1.msra.mxu0 0.0
      %1273 = vmatprep.subr.mxu0 0.0
      %1274 = vmatpush1.msra.mxu0 0.0
      %1275 = vmatprep.subr.mxu0 0.0
      %1276 = vmatpush1.msra.mxu0 0.0
      %1277 = vmatprep.subr.mxu0 0.0
      %1278 = vmatpush1.msra.mxu0 0.0
      %1279 = vmatprep.subr.mxu0 0.0
      %1280 = vmatpush1.msra.mxu0 0.0
      %1281 = vmatprep.subr.mxu0 0.0
      %1282 = vmatpush1.msra.mxu0 0.0
      %1283 = vmatprep.subr.mxu0 0.0
      %1284 = vmatpush1.msra.mxu0 0.0
      %1285 = vmatprep.subr.mxu0 0.0
      %1286 = vmatpush1.msra.mxu0 0.0
      %1287 = vmatprep.subr.mxu0 0.0
      %1288 = vmatpush1.msra.mxu0 0.0
      %1289 = vmatprep.subr.mxu0 0.0
      %1290 = vmatpush1.msra.mxu0 0.0
      %1291 = vmatprep.subr.mxu0 0.0
      %1292 = vmatpush1.msra.mxu0 0.0
      %1293 = vmatprep.subr.mxu0 0.0
      %1294 = vmatpush1.msra.mxu0 0.0
      %1295 = vmatprep.subr.mxu0 0.0
      %1296 = vmatpush1.msra.mxu0 0.0
      %1297 = vmatprep.subr.mxu0 0.0
      %1298 = vmatpush1.msra.mxu0 0.0
      %1299 = vmatprep.mubr.f32.mxu0 0.0
      %1300 = vmatmul.mubr.f32.gmra.mrb[0].mxu0 %v1215
      %v1301 = vpop.f32.mrb[0].mxu0
      %v1302 = vadd.f32 0.0, %v1301
      %v1303 = vpop.f32.mrb[0].mxu0
      %1304 = vmatprep.mubr.f32.mxu0 0.0
      %1305 = vmatmul.mubr.f32.gmra.mrb[0].mxu0 %v1216
      %v1306 = vpop.f32.mrb[0].mxu0
      %v1307 = vadd.f32 0.0, %v1306
      %v1308 = vpop.f32.mrb[0].mxu0
      %1309 = vmatprep.mubr.f32.mxu0 0.0
      %1310 = vmatmul.mubr.f32.gmra.mrb[0].mxu0 %v1217
      %v1311 = vpop.f32.mrb[0].mxu0
      %v1312 = vadd.f32 0.0, %v1311
      %v1313 = vpop.f32.mrb[0].mxu0
      %1314 = vdwg.mxu0
      %v1315 = vadd.f32 %v1212, %v1302
      %v1316 = vadd.f32 %v1213, %v1307
      %v1317 = vadd.f32 %v1214, %v1312
      %v1318 = vld [vmem:[#allocation2 + $0x10] sm:$0xfe]
      %v1319 = vld [vmem:[#allocation2 + $0x50] sm:$0x1f]
      %s1320 = scalar_lea.vmem %s3, 640
      %v1321 = vld [vmem:[%s1320] sm:$0xff]
      %v1322 = vld [vmem:[%s1320 + $0x8] sm:$0xff]
      %v1323 = vld [vmem:[%s1320 + $0x10] sm:$0xff]
      %v1324 = vld [vmem:[%s1320 + $0x18] sm:$0xff]
      %v1325 = vld [vmem:[%s1320 + $0x20] sm:$0xff]
      %v1326 = vld [vmem:[%s1320 + $0x28] sm:$0xff]
      %v1327 = vld [vmem:[%s1320 + $0x30] sm:$0xff]
      %v1328 = vld [vmem:[%s1320 + $0x38] sm:$0xff]
      %v1329 = vld [vmem:[%s1320 + $0x40] sm:$0xff]
      %v1330 = vld [vmem:[%s1320 + $0x48] sm:$0xff]
      %v1331 = vld [vmem:[%s1320 + $0x50] sm:$0xff]
      %v1332 = vld [vmem:[%s1320 + $0x58] sm:$0xff]
      %v1333 = vld [vmem:[%s1320 + $0x60] sm:$0xff]
      %v1334 = vld [vmem:[%s1320 + $0x68] sm:$0xff]
      %v1335 = vld [vmem:[%s1320 + $0x70] sm:$0xff]
      %v1336 = vld [vmem:[%s1320 + $0x78] sm:$0xff]
      %v1340 = vrot.slane %v1318, 1
      %v1341 = vrot.slane %v1113, 1
      %v1342 = vsel %vm1020, %v1340, %v1341
      %v1343 = vrot.slane %v1319, 1
      %v1344 = vsel %vm1020, %v1341, %v1343
      %1348 = vmatprep.subr.mxu0 0.0
      %1349 = vmatpush1.msra.mxu0 %v1321
      %1350 = vmatprep.subr.mxu0 0.0
      %1351 = vmatpush1.msra.mxu0 %v1322
      %1352 = vmatprep.subr.mxu0 0.0
      %1353 = vmatpush1.msra.mxu0 %v1323
      %1354 = vmatprep.subr.mxu0 0.0
      %1355 = vmatpush1.msra.mxu0 %v1324
      %1356 = vmatprep.subr.mxu0 0.0
      %1357 = vmatpush1.msra.mxu0 %v1325
      %1358 = vmatprep.subr.mxu0 0.0
      %1359 = vmatpush1.msra.mxu0 %v1326
      %1360 = vmatprep.subr.mxu0 0.0
      %1361 = vmatpush1.msra.mxu0 %v1327
      %1362 = vmatprep.subr.mxu0 0.0
      %1363 = vmatpush1.msra.mxu0 %v1328
      %1364 = vmatprep.subr.mxu0 0.0
      %1365 = vmatpush1.msra.mxu0 %v1329
      %1366 = vmatprep.subr.mxu0 0.0
      %1367 = vmatpush1.msra.mxu0 %v1330
      %1368 = vmatprep.subr.mxu0 0.0
      %1369 = vmatpush1.msra.mxu0 %v1331
      %1370 = vmatprep.subr.mxu0 0.0
      %1371 = vmatpush1.msra.mxu0 %v1332
      %1372 = vmatprep.subr.mxu0 0.0
      %1373 = vmatpush1.msra.mxu0 %v1333
      %1374 = vmatprep.subr.mxu0 0.0
      %1375 = vmatpush1.msra.mxu0 %v1334
      %1376 = vmatprep.subr.mxu0 0.0
      %1377 = vmatpush1.msra.mxu0 %v1335
      %1378 = vmatprep.subr.mxu0 0.0
      %1379 = vmatpush1.msra.mxu0 %v1336
      %1380 = vmatprep.subr.mxu0 0.0
      %1381 = vmatpush1.msra.mxu0 0.0
      %1382 = vmatprep.subr.mxu0 0.0
      %1383 = vmatpush1.msra.mxu0 0.0
      %1384 = vmatprep.subr.mxu0 0.0
      %1385 = vmatpush1.msra.mxu0 0.0
      %1386 = vmatprep.subr.mxu0 0.0
      %1387 = vmatpush1.msra.mxu0 0.0
      %1388 = vmatprep.subr.mxu0 0.0
      %1389 = vmatpush1.msra.mxu0 0.0
      %1390 = vmatprep.subr.mxu0 0.0
      %1391 = vmatpush1.msra.mxu0 0.0
      %1392 = vmatprep.subr.mxu0 0.0
      %1393 = vmatpush1.msra.mxu0 0.0
      %1394 = vmatprep.subr.mxu0 0.0
      %1395 = vmatpush1.msra.mxu0 0.0
      %1396 = vmatprep.subr.mxu0 0.0
      %1397 = vmatpush1.msra.mxu0 0.0
      %1398 = vmatprep.subr.mxu0 0.0
      %1399 = vmatpush1.msra.mxu0 0.0
      %1400 = vmatprep.subr.mxu0 0.0
      %1401 = vmatpush1.msra.mxu0 0.0
      %1402 = vmatprep.subr.mxu0 0.0
      %1403 = vmatpush1.msra.mxu0 0.0
      %1404 = vmatprep.subr.mxu0 0.0
      %1405 = vmatpush1.msra.mxu0 0.0
      %1406 = vmatprep.subr.mxu0 0.0
      %1407 = vmatpush1.msra.mxu0 0.0
      %1408 = vmatprep.subr.mxu0 0.0
      %1409 = vmatpush1.msra.mxu0 0.0
      %1410 = vmatprep.subr.mxu0 0.0
      %1411 = vmatpush1.msra.mxu0 0.0
      %1412 = vmatprep.mubr.f32.mxu0 0.0
      %1413 = vmatmul.mubr.f32.gmra.mrb[0].mxu0 %v1342
      %v1414 = vpop.f32.mrb[0].mxu0
      %v1415 = vadd.f32 0.0, %v1414
      %v1416 = vpop.f32.mrb[0].mxu0
      %1417 = vmatprep.mubr.f32.mxu0 0.0
      %1418 = vmatmul.mubr.f32.gmra.mrb[0].mxu0 %v1344
      %v1419 = vpop.f32.mrb[0].mxu0
      %v1420 = vadd.f32 0.0, %v1419
      %v1421 = vpop.f32.mrb[0].mxu0
      %1422 = vmatprep.mubr.f32.mxu0 0.0
      %1423 = vmatmul.mubr.f32.gmra.mrb[0].mxu0 %v1343
      %v1424 = vpop.f32.mrb[0].mxu0
      %v1425 = vadd.f32 0.0, %v1424
      %v1426 = vpop.f32.mrb[0].mxu0
      %1427 = vdwg.mxu0
      %v1428 = vadd.f32 %v1315, %v1415
      %v1429 = vadd.f32 %v1316, %v1420
      %v1430 = vadd.f32 %v1317, %v1425
      %v1431 = vld [vmem:[#allocation2] sm:$0xe0]
      %v1432 = vld [vmem:[#allocation2 + $0x20] sm:$0xff]
      %v1433 = vld [vmem:[#allocation2 + $0x40] sm:$0xff]
      %v1434 = vld [vmem:[#allocation2 + $0x60] sm:$0x1]
      %s1435 = scalar_lea.vmem %s3, 768
      %v1436 = vld [vmem:[%s1435] sm:$0xff]
      %v1437 = vld [vmem:[%s1435 + $0x8] sm:$0xff]
      %v1438 = vld [vmem:[%s1435 + $0x10] sm:$0xff]
      %v1439 = vld [vmem:[%s1435 + $0x18] sm:$0xff]
      %v1440 = vld [vmem:[%s1435 + $0x20] sm:$0xff]
      %v1441 = vld [vmem:[%s1435 + $0x28] sm:$0xff]
      %v1442 = vld [vmem:[%s1435 + $0x30] sm:$0xff]
      %v1443 = vld [vmem:[%s1435 + $0x38] sm:$0xff]
      %v1444 = vld [vmem:[%s1435 + $0x40] sm:$0xff]
      %v1445 = vld [vmem:[%s1435 + $0x48] sm:$0xff]
      %v1446 = vld [vmem:[%s1435 + $0x50] sm:$0xff]
      %v1447 = vld [vmem:[%s1435 + $0x58] sm:$0xff]
      %v1448 = vld [vmem:[%s1435 + $0x60] sm:$0xff]
      %v1449 = vld [vmem:[%s1435 + $0x68] sm:$0xff]
      %v1450 = vld [vmem:[%s1435 + $0x70] sm:$0xff]
      %v1451 = vld [vmem:[%s1435 + $0x78] sm:$0xff]
      %vm1456 = vcmask 1042432
      %v1457 = vrot.slane %v1431, 5
      %v1458 = vrot.slane %v1432, 5
      %v1459 = vsel %vm1456, %v1457, %v1458
      %v1460 = vrot.slane %v1433, 5
      %v1461 = vsel %vm1456, %v1458, %v1460
      %v1462 = vrot.slane %v1434, 5
      %v1463 = vsel %vm1456, %v1460, %v1462
      %1467 = vmatprep.subr.mxu0 0.0
      %1468 = vmatpush1.msra.mxu0 %v1436
      %1469 = vmatprep.subr.mxu0 0.0
      %1470 = vmatpush1.msra.mxu0 %v1437
      %1471 = vmatprep.subr.mxu0 0.0
      %1472 = vmatpush1.msra.mxu0 %v1438
      %1473 = vmatprep.subr.mxu0 0.0
      %1474 = vmatpush1.msra.mxu0 %v1439
      %1475 = vmatprep.subr.mxu0 0.0
      %1476 = vmatpush1.msra.mxu0 %v1440
      %1477 = vmatprep.subr.mxu0 0.0
      %1478 = vmatpush1.msra.mxu0 %v1441
      %1479 = vmatprep.subr.mxu0 0.0
      %1480 = vmatpush1.msra.mxu0 %v1442
      %1481 = vmatprep.subr.mxu0 0.0
      %1482 = vmatpush1.msra.mxu0 %v1443
      %1483 = vmatprep.subr.mxu0 0.0
      %1484 = vmatpush1.msra.mxu0 %v1444
      %1485 = vmatprep.subr.mxu0 0.0
      %1486 = vmatpush1.msra.mxu0 %v1445
      %1487 = vmatprep.subr.mxu0 0.0
      %1488 = vmatpush1.msra.mxu0 %v1446
      %1489 = vmatprep.subr.mxu0 0.0
      %1490 = vmatpush1.msra.mxu0 %v1447
      %1491 = vmatprep.subr.mxu0 0.0
      %1492 = vmatpush1.msra.mxu0 %v1448
      %1493 = vmatprep.subr.mxu0 0.0
      %1494 = vmatpush1.msra.mxu0 %v1449
      %1495 = vmatprep.subr.mxu0 0.0
      %1496 = vmatpush1.msra.mxu0 %v1450
      %1497 = vmatprep.subr.mxu0 0.0
      %1498 = vmatpush1.msra.mxu0 %v1451
      %1499 = vmatprep.subr.mxu0 0.0
      %1500 = vmatpush1.msra.mxu0 0.0
      %1501 = vmatprep.subr.mxu0 0.0
      %1502 = vmatpush1.msra.mxu0 0.0
      %1503 = vmatprep.subr.mxu0 0.0
      %1504 = vmatpush1.msra.mxu0 0.0
      %1505 = vmatprep.subr.mxu0 0.0
      %1506 = vmatpush1.msra.mxu0 0.0
      %1507 = vmatprep.subr.mxu0 0.0
      %1508 = vmatpush1.msra.mxu0 0.0
      %1509 = vmatprep.subr.mxu0 0.0
      %1510 = vmatpush1.msra.mxu0 0.0
      %1511 = vmatprep.subr.mxu0 0.0
      %1512 = vmatpush1.msra.mxu0 0.0
      %1513 = vmatprep.subr.mxu0 0.0
      %1514 = vmatpush1.msra.mxu0 0.0
      %1515 = vmatprep.subr.mxu0 0.0
      %1516 = vmatpush1.msra.mxu0 0.0
      %1517 = vmatprep.subr.mxu0 0.0
      %1518 = vmatpush1.msra.mxu0 0.0
      %1519 = vmatprep.subr.mxu0 0.0
      %1520 = vmatpush1.msra.mxu0 0.0
      %1521 = vmatprep.subr.mxu0 0.0
      %1522 = vmatpush1.msra.mxu0 0.0
      %1523 = vmatprep.subr.mxu0 0.0
      %1524 = vmatpush1.msra.mxu0 0.0
      %1525 = vmatprep.subr.mxu0 0.0
      %1526 = vmatpush1.msra.mxu0 0.0
      %1527 = vmatprep.subr.mxu0 0.0
      %1528 = vmatpush1.msra.mxu0 0.0
      %1529 = vmatprep.subr.mxu0 0.0
      %1530 = vmatpush1.msra.mxu0 0.0
      %1531 = vmatprep.mubr.f32.mxu0 0.0
      %1532 = vmatmul.mubr.f32.gmra.mrb[0].mxu0 %v1459
      %v1533 = vpop.f32.mrb[0].mxu0
      %v1534 = vadd.f32 0.0, %v1533
      %v1535 = vpop.f32.mrb[0].mxu0
      %1536 = vmatprep.mubr.f32.mxu0 0.0
      %1537 = vmatmul.mubr.f32.gmra.mrb[0].mxu0 %v1461
      %v1538 = vpop.f32.mrb[0].mxu0
      %v1539 = vadd.f32 0.0, %v1538
      %v1540 = vpop.f32.mrb[0].mxu0
      %1541 = vmatprep.mubr.f32.mxu0 0.0
      %1542 = vmatmul.mubr.f32.gmra.mrb[0].mxu0 %v1463
      %v1543 = vpop.f32.mrb[0].mxu0
      %v1544 = vadd.f32 0.0, %v1543
      %v1545 = vpop.f32.mrb[0].mxu0
      %1546 = vdwg.mxu0
      %v1547 = vadd.f32 %v1428, %v1534
      %v1548 = vadd.f32 %v1429, %v1539
      %v1549 = vadd.f32 %v1430, %v1544
      %v1550 = vld [vmem:[#allocation2 + $0x8] sm:$0xe0]
      %v1551 = vld [vmem:[#allocation2 + $0x28] sm:$0xff]
      %v1552 = vld [vmem:[#allocation2 + $0x48] sm:$0xff]
      %v1553 = vld [vmem:[#allocation2 + $0x68] sm:$0x1]
      %s1554 = scalar_lea.vmem %s3, 896
      %v1555 = vld [vmem:[%s1554] sm:$0xff]
      %v1556 = vld [vmem:[%s1554 + $0x8] sm:$0xff]
      %v1557 = vld [vmem:[%s1554 + $0x10] sm:$0xff]
      %v1558 = vld [vmem:[%s1554 + $0x18] sm:$0xff]
      %v1559 = vld [vmem:[%s1554 + $0x20] sm:$0xff]
      %v1560 = vld [vmem:[%s1554 + $0x28] sm:$0xff]
      %v1561 = vld [vmem:[%s1554 + $0x30] sm:$0xff]
      %v1562 = vld [vmem:[%s1554 + $0x38] sm:$0xff]
      %v1563 = vld [vmem:[%s1554 + $0x40] sm:$0xff]
      %v1564 = vld [vmem:[%s1554 + $0x48] sm:$0xff]
      %v1565 = vld [vmem:[%s1554 + $0x50] sm:$0xff]
      %v1566 = vld [vmem:[%s1554 + $0x58] sm:$0xff]
      %v1567 = vld [vmem:[%s1554 + $0x60] sm:$0xff]
      %v1568 = vld [vmem:[%s1554 + $0x68] sm:$0xff]
      %v1569 = vld [vmem:[%s1554 + $0x70] sm:$0xff]
      %v1570 = vld [vmem:[%s1554 + $0x78] sm:$0xff]
      %v1575 = vrot.slane %v1550, 5
      %v1576 = vrot.slane %v1551, 5
      %v1577 = vsel %vm1456, %v1575, %v1576
      %v1578 = vrot.slane %v1552, 5
      %v1579 = vsel %vm1456, %v1576, %v1578
      %v1580 = vrot.slane %v1553, 5
      %v1581 = vsel %vm1456, %v1578, %v1580
      %1585 = vmatprep.subr.mxu0 0.0
      %1586 = vmatpush1.msra.mxu0 %v1555
      %1587 = vmatprep.subr.mxu0 0.0
      %1588 = vmatpush1.msra.mxu0 %v1556
      %1589 = vmatprep.subr.mxu0 0.0
      %1590 = vmatpush1.msra.mxu0 %v1557
      %1591 = vmatprep.subr.mxu0 0.0
      %1592 = vmatpush1.msra.mxu0 %v1558
      %1593 = vmatprep.subr.mxu0 0.0
      %1594 = vmatpush1.msra.mxu0 %v1559
      %1595 = vmatprep.subr.mxu0 0.0
      %1596 = vmatpush1.msra.mxu0 %v1560
      %1597 = vmatprep.subr.mxu0 0.0
      %1598 = vmatpush1.msra.mxu0 %v1561
      %1599 = vmatprep.subr.mxu0 0.0
      %1600 = vmatpush1.msra.mxu0 %v1562
      %1601 = vmatprep.subr.mxu0 0.0
      %1602 = vmatpush1.msra.mxu0 %v1563
      %1603 = vmatprep.subr.mxu0 0.0
      %1604 = vmatpush1.msra.mxu0 %v1564
      %1605 = vmatprep.subr.mxu0 0.0
      %1606 = vmatpush1.msra.mxu0 %v1565
      %1607 = vmatprep.subr.mxu0 0.0
      %1608 = vmatpush1.msra.mxu0 %v1566
      %1609 = vmatprep.subr.mxu0 0.0
      %1610 = vmatpush1.msra.mxu0 %v1567
      %1611 = vmatprep.subr.mxu0 0.0
      %1612 = vmatpush1.msra.mxu0 %v1568
      %1613 = vmatprep.subr.mxu0 0.0
      %1614 = vmatpush1.msra.mxu0 %v1569
      %1615 = vmatprep.subr.mxu0 0.0
      %1616 = vmatpush1.msra.mxu0 %v1570
      %1617 = vmatprep.subr.mxu0 0.0
      %1618 = vmatpush1.msra.mxu0 0.0
      %1619 = vmatprep.subr.mxu0 0.0
      %1620 = vmatpush1.msra.mxu0 0.0
      %1621 = vmatprep.subr.mxu0 0.0
      %1622 = vmatpush1.msra.mxu0 0.0
      %1623 = vmatprep.subr.mxu0 0.0
      %1624 = vmatpush1.msra.mxu0 0.0
      %1625 = vmatprep.subr.mxu0 0.0
      %1626 = vmatpush1.msra.mxu0 0.0
      %1627 = vmatprep.subr.mxu0 0.0
      %1628 = vmatpush1.msra.mxu0 0.0
      %1629 = vmatprep.subr.mxu0 0.0
      %1630 = vmatpush1.msra.mxu0 0.0
      %1631 = vmatprep.subr.mxu0 0.0
      %1632 = vmatpush1.msra.mxu0 0.0
      %1633 = vmatprep.subr.mxu0 0.0
      %1634 = vmatpush1.msra.mxu0 0.0
      %1635 = vmatprep.subr.mxu0 0.0
      %1636 = vmatpush1.msra.mxu0 0.0
      %1637 = vmatprep.subr.mxu0 0.0
      %1638 = vmatpush1.msra.mxu0 0.0
      %1639 = vmatprep.subr.mxu0 0.0
      %1640 = vmatpush1.msra.mxu0 0.0
      %1641 = vmatprep.subr.mxu0 0.0
      %1642 = vmatpush1.msra.mxu0 0.0
      %1643 = vmatprep.subr.mxu0 0.0
      %1644 = vmatpush1.msra.mxu0 0.0
      %1645 = vmatprep.subr.mxu0 0.0
      %1646 = vmatpush1.msra.mxu0 0.0
      %1647 = vmatprep.subr.mxu0 0.0
      %1648 = vmatpush1.msra.mxu0 0.0
      %1649 = vmatprep.mubr.f32.mxu0 0.0
      %1650 = vmatmul.mubr.f32.gmra.mrb[0].mxu0 %v1577
      %v1651 = vpop.f32.mrb[0].mxu0
      %v1652 = vadd.f32 0.0, %v1651
      %v1653 = vpop.f32.mrb[0].mxu0
      %1654 = vmatprep.mubr.f32.mxu0 0.0
      %1655 = vmatmul.mubr.f32.gmra.mrb[0].mxu0 %v1579
      %v1656 = vpop.f32.mrb[0].mxu0
      %v1657 = vadd.f32 0.0, %v1656
      %v1658 = vpop.f32.mrb[0].mxu0
      %1659 = vmatprep.mubr.f32.mxu0 0.0
      %1660 = vmatmul.mubr.f32.gmra.mrb[0].mxu0 %v1581
      %v1661 = vpop.f32.mrb[0].mxu0
      %v1662 = vadd.f32 0.0, %v1661
      %v1663 = vpop.f32.mrb[0].mxu0
      %1664 = vdwg.mxu0
      %v1665 = vadd.f32 %v1547, %v1652
      %v1666 = vadd.f32 %v1548, %v1657
      %v1667 = vadd.f32 %v1549, %v1662
      %v1668 = vld [vmem:[#allocation2] sm:$0xc0]
      %v1669 = vld [vmem:[#allocation2 + $0x60] sm:$0x3]
      %s1670 = scalar_lea.vmem %s3, 1024
      %v1671 = vld [vmem:[%s1670] sm:$0xff]
      %v1672 = vld [vmem:[%s1670 + $0x8] sm:$0xff]
      %v1673 = vld [vmem:[%s1670 + $0x10] sm:$0xff]
      %v1674 = vld [vmem:[%s1670 + $0x18] sm:$0xff]
      %v1675 = vld [vmem:[%s1670 + $0x20] sm:$0xff]
      %v1676 = vld [vmem:[%s1670 + $0x28] sm:$0xff]
      %v1677 = vld [vmem:[%s1670 + $0x30] sm:$0xff]
      %v1678 = vld [vmem:[%s1670 + $0x38] sm:$0xff]
      %v1679 = vld [vmem:[%s1670 + $0x40] sm:$0xff]
      %v1680 = vld [vmem:[%s1670 + $0x48] sm:$0xff]
      %v1681 = vld [vmem:[%s1670 + $0x50] sm:$0xff]
      %v1682 = vld [vmem:[%s1670 + $0x58] sm:$0xff]
      %v1683 = vld [vmem:[%s1670 + $0x60] sm:$0xff]
      %v1684 = vld [vmem:[%s1670 + $0x68] sm:$0xff]
      %v1685 = vld [vmem:[%s1670 + $0x70] sm:$0xff]
      %v1686 = vld [vmem:[%s1670 + $0x78] sm:$0xff]
      %vm1689 = vcmask 1041408
      %v1690 = vrot.slane %v1668, 6
      %v1691 = vrot.slane %v1432, 6
      %v1692 = vsel %vm1689, %v1690, %v1691
      %v1693 = vrot.slane %v1433, 6
      %v1694 = vsel %vm1689, %v1691, %v1693
      %v1695 = vrot.slane %v1669, 6
      %v1696 = vsel %vm1689, %v1693, %v1695
      %1700 = vmatprep.subr.mxu0 0.0
      %1701 = vmatpush1.msra.mxu0 %v1671
      %1702 = vmatprep.subr.mxu0 0.0
      %1703 = vmatpush1.msra.mxu0 %v1672
      %1704 = vmatprep.subr.mxu0 0.0
      %1705 = vmatpush1.msra.mxu0 %v1673
      %1706 = vmatprep.subr.mxu0 0.0
      %1707 = vmatpush1.msra.mxu0 %v1674
      %1708 = vmatprep.subr.mxu0 0.0
      %1709 = vmatpush1.msra.mxu0 %v1675
      %1710 = vmatprep.subr.mxu0 0.0
      %1711 = vmatpush1.msra.mxu0 %v1676
      %1712 = vmatprep.subr.mxu0 0.0
      %1713 = vmatpush1.msra.mxu0 %v1677
      %1714 = vmatprep.subr.mxu0 0.0
      %1715 = vmatpush1.msra.mxu0 %v1678
      %1716 = vmatprep.subr.mxu0 0.0
      %1717 = vmatpush1.msra.mxu0 %v1679
      %1718 = vmatprep.subr.mxu0 0.0
      %1719 = vmatpush1.msra.mxu0 %v1680
      %1720 = vmatprep.subr.mxu0 0.0
      %1721 = vmatpush1.msra.mxu0 %v1681
      %1722 = vmatprep.subr.mxu0 0.0
      %1723 = vmatpush1.msra.mxu0 %v1682
      %1724 = vmatprep.subr.mxu0 0.0
      %1725 = vmatpush1.msra.mxu0 %v1683
      %1726 = vmatprep.subr.mxu0 0.0
      %1727 = vmatpush1.msra.mxu0 %v1684
      %1728 = vmatprep.subr.mxu0 0.0
      %1729 = vmatpush1.msra.mxu0 %v1685
      %1730 = vmatprep.subr.mxu0 0.0
      %1731 = vmatpush1.msra.mxu0 %v1686
      %1732 = vmatprep.subr.mxu0 0.0
      %1733 = vmatpush1.msra.mxu0 0.0
      %1734 = vmatprep.subr.mxu0 0.0
      %1735 = vmatpush1.msra.mxu0 0.0
      %1736 = vmatprep.subr.mxu0 0.0
      %1737 = vmatpush1.msra.mxu0 0.0
      %1738 = vmatprep.subr.mxu0 0.0
      %1739 = vmatpush1.msra.mxu0 0.0
      %1740 = vmatprep.subr.mxu0 0.0
      %1741 = vmatpush1.msra.mxu0 0.0
      %1742 = vmatprep.subr.mxu0 0.0
      %1743 = vmatpush1.msra.mxu0 0.0
      %1744 = vmatprep.subr.mxu0 0.0
      %1745 = vmatpush1.msra.mxu0 0.0
      %1746 = vmatprep.subr.mxu0 0.0
      %1747 = vmatpush1.msra.mxu0 0.0
      %1748 = vmatprep.subr.mxu0 0.0
      %1749 = vmatpush1.msra.mxu0 0.0
      %1750 = vmatprep.subr.mxu0 0.0
      %1751 = vmatpush1.msra.mxu0 0.0
      %1752 = vmatprep.subr.mxu0 0.0
      %1753 = vmatpush1.msra.mxu0 0.0
      %1754 = vmatprep.subr.mxu0 0.0
      %1755 = vmatpush1.msra.mxu0 0.0
      %1756 = vmatprep.subr.mxu0 0.0
      %1757 = vmatpush1.msra.mxu0 0.0
      %1758 = vmatprep.subr.mxu0 0.0
      %1759 = vmatpush1.msra.mxu0 0.0
      %1760 = vmatprep.subr.mxu0 0.0
      %1761 = vmatpush1.msra.mxu0 0.0
      %1762 = vmatprep.subr.mxu0 0.0
      %1763 = vmatpush1.msra.mxu0 0.0
      %1764 = vmatprep.mubr.f32.mxu0 0.0
      %1765 = vmatmul.mubr.f32.gmra.mrb[0].mxu0 %v1692
      %v1766 = vpop.f32.mrb[0].mxu0
      %v1767 = vadd.f32 0.0, %v1766
      %v1768 = vpop.f32.mrb[0].mxu0
      %1769 = vmatprep.mubr.f32.mxu0 0.0
      %1770 = vmatmul.mubr.f32.gmra.mrb[0].mxu0 %v1694
      %v1771 = vpop.f32.mrb[0].mxu0
      %v1772 = vadd.f32 0.0, %v1771
      %v1773 = vpop.f32.mrb[0].mxu0
      %1774 = vmatprep.mubr.f32.mxu0 0.0
      %1775 = vmatmul.mubr.f32.gmra.mrb[0].mxu0 %v1696
      %v1776 = vpop.f32.mrb[0].mxu0
      %v1777 = vadd.f32 0.0, %v1776
      %v1778 = vpop.f32.mrb[0].mxu0
      %1779 = vdwg.mxu0
      %v1780 = vadd.f32 %v1665, %v1767
      %v1781 = vadd.f32 %v1666, %v1772
      %v1782 = vadd.f32 %v1667, %v1777
      %v1783 = vld [vmem:[%s4] sm:$0x1]
      %v1785 = vlaneseq
      %v1786 = vshrl.u32 %v1785, 7
      %v1787 = vsub.s32 0, %v1786
      %v1788 = vrot.slane %v1783, %v1787
      %v1790 = vadd.f32 %v1780, %v1788
      %v1791 = vadd.f32 %v1781, %v1788
      %v1792 = vadd.f32 %v1782, %v1788
      %v1793 = vmax.f32 %v1790, 0.0
      %v1794 = vmax.f32 %v1791, 0.0
      %v1795 = vmax.f32 %v1792, 0.0
      %1796 = vst [vmem:[%s224] sm:$0xff] %v1793
      %1797 = vst [vmem:[%s224 + $0x8] sm:$0xff] %v1794
      %1798 = vst [vmem:[%s224 + $0x10] sm:$0xf] %v1795
      %p1799 = scmp.lt.s32.totalorder %s16, 1
      %s1800 = scalar_select %p1799, %s16, 1
      %s1801 = smul.addr %s1800, 3
      %s1802 = smul.addr %s1801, 8
      %s1803 = scalar_lea.vmem %s5, %s1802
      // Predicated region
      $region41: #{feature_extractor_modified.1} parent=39 // pred_check
        %p1804 = pneg %p144
      $region42: #{feature_extractor_modified.1} parent=39 // pred_check_branch
        %1806 = sbr.rel (%p1804) target = $region44
      $region43: #{feature_extractor_modified.1} parent=39 // pred_region
        _
      $region44: #{feature_extractor_modified.1} parent=39 // pred_fallthru
        _
    $region40: #{feature_extractor_modified.1} parent=5 // pred_fallthru
      _
    %p1807 = scmp.le.s32.totalorder 2, %s11
    // Predicated region
    $region45: #{feature_extractor_modified.1} parent=5 // pred_check
      %p1808 = pneg %p1807
    $region46: #{feature_extractor_modified.1} parent=5 // pred_check_branch
      %1810 = sbr.rel (%p1808) target = $region48
    $region47: #{feature_extractor_modified.1} parent=5 // pred_region
      %s1811 = ssub.s32 %s11, 2
      // Predicated region
      $region49: #{feature_extractor_modified.1} parent=47 // pred_check
        %p1812 = pneg %p150
      $region50: #{feature_extractor_modified.1} parent=47 // pred_check_branch
        %1814 = sbr.rel (%p1812) target = $region52
      $region51: #{feature_extractor_modified.1} parent=47 // pred_region
        %p1815 = scmp.lt.s32.totalorder %s17, 1
        %s1816 = scalar_select %p1815, %s17, 1
        %s1817 = smul.addr %s1816, 3
        %s1818 = smul.addr %s1817, 8
        %s1819 = scalar_lea.vmem %s5, %s1818
      $region52: #{feature_extractor_modified.1} parent=47 // pred_fallthru
        _
    $region48: #{feature_extractor_modified.1} parent=5 // pred_fallthru
      _
  $region6: #{feature_extractor_modified.1} parent=0 // loop_footer
    %s15 = sadd.s32 1, %s11
  $region7: #{feature_extractor_modified.1} parent=0 // loop_footer_branch
    %10 = sbr.rel target = $region3
  $region8: #{feature_extractor_modified.1} parent=0 // loop_exit
    _

</llo_original>
